<compile_context>
chip_gen: v6e
topology: v6e:2x2x1
jax: 0.10.0
libtpu: 0.0.40
codegen_flags: <defaults>
</compile_context>

<pallas_src>
import math
import functools

import jax
import jax.numpy as jnp
from jax import lax
from jax.experimental import pallas as pl
from jax.experimental.pallas import tpu as pltpu

LN_EPS = 1e-6          # matches nn.LayerNorm(eps=1e-6) in the reference transformer
_VMEM_LIMIT = 48 * 1024 * 1024   # explicit scoped-VMEM budget (safe on v5e/v6e/v7x)
_ROW_ALIGN = 16                  # bf16-safe sublane granularity for row tiles


# ----------------------------- helpers -----------------------------

def _cparams(*sem):
    return pltpu.CompilerParams(dimension_semantics=sem,
                                vmem_limit_bytes=_VMEM_LIMIT)


def _row_tile_and_pad(m, pref=512):
    """Row tile + padded row count. Always tiles (never a single giant block)."""
    ma = ((m + _ROW_ALIGN - 1) // _ROW_ALIGN) * _ROW_ALIGN
    if ma <= pref:
        return ma, ma
    for t in range(pref, _ROW_ALIGN - 1, -_ROW_ALIGN):
        if ma % t == 0:
            return t, ma
    m_pad = ((ma + pref - 1) // pref) * pref
    return pref, m_pad


def _pad_rows(x, m_pad):
    m = x.shape[0]
    if m_pad == m:
        return x
    return jnp.pad(x, ((0, m_pad - m), (0, 0)))


def _seq_tile(l, pref=256):
    """Lq tile for the attention grid (multiple of 32 so an int8 mask block is legal)."""
    if l <= pref:
        return l
    for t in range(pref, 31, -32):
        if l % t == 0:
            return t
    return l  # TODO(synk): pad Lq upstream for lengths with no 32-aligned divisor


# ----------------------------- Pallas kernels -----------------------------

def _proj_kernel(x_ref, w_ref, b_ref, o_ref):
    # x: [tm, Din] f32, w: [Din, Dtot] bf16, b: [1, Dtot] f32 -> o: [tm, Dtot] bf16
    y = jnp.dot(x_ref[...].astype(jnp.bfloat16), w_ref[...],
                preferred_element_type=jnp.float32) + b_ref[...]
    o_ref[...] = y.astype(o_ref.dtype)


def _outproj_add_ln_kernel(x_ref, w_ref, b_ref, res_ref, g_ref, bb_ref, o_ref):
    # fused: y = ctx(bf16) @ Wo(bf16) + bo; y += residual(f32); y = LN(y)*g + b
    y = jnp.dot(x_ref[...], w_ref[...],
                preferred_element_type=jnp.float32) + b_ref[...]
    y = y + res_ref[...]
    mu = jnp.mean(y, axis=-1, keepdims=True)
    d = y - mu
    var = jnp.mean(d * d, axis=-1, keepdims=True)
    o_ref[...] = d * lax.rsqrt(var + LN_EPS) * g_ref[...] + bb_ref[...]


def _ffn_add_ln_kernel(x_ref, w1_ref, b1_ref, w2_ref, b2_ref, g_ref, bb_ref, o_ref):
    # fused: Linear -> ReLU -> Linear -> +residual(x) -> LayerNorm
    x = x_ref[...]
    h = jnp.dot(x.astype(jnp.bfloat16), w1_ref[...],
                preferred_element_type=jnp.float32) + b1_ref[...]
    h = jnp.maximum(h, 0.0)
    y = jnp.dot(h.astype(jnp.bfloat16), w2_ref[...],
                preferred_element_type=jnp.float32) + b2_ref[...]
    y = y + x
    mu = jnp.mean(y, axis=-1, keepdims=True)
    d = y - mu
    var = jnp.mean(d * d, axis=-1, keepdims=True)
    o_ref[...] = d * lax.rsqrt(var + LN_EPS) * g_ref[...] + bb_ref[...]


def _attn_kernel(*refs, has_mask):
    # One grid step = one batch element x one Lq tile, ALL heads batched on the MXU.
    # q: [1, H, tq, dk] bf16 (1/sqrt(dk) pre-folded into W_q)
    # k: [1, H, Lk, dk] bf16, v: [1, H, Lk, dv] bf16, mask: [1, tq, Lk] int8
    # outputs: attn [1, H, tq, Lk] bf16, ctx [1, H, tq, dv] bf16
    if has_mask:
        q_ref, k_ref, v_ref, m_ref, attn_ref, ctx_ref = refs
    else:
        q_ref, k_ref, v_ref, attn_ref, ctx_ref = refs
        m_ref = None

    q = q_ref[0]
    k = k_ref[0]
    v = v_ref[0]

    # scores = q @ k^T, batched over heads, bf16 operands -> f32 accumulation.
    s = lax.dot_general(q, k, (((2,), (2,)), ((0,), (0,))),
                        preferred_element_type=jnp.float32)         # [H, tq, Lk]
    if m_ref is not None:
        keep = m_ref[...] != 0                                       # [1, tq, Lk]
        s = jnp.where(keep, s, -1e9)

    s = s - jnp.max(s, axis=-1, keepdims=True)
    p = jnp.exp(s)
    p = p * pl.reciprocal(jnp.sum(p, axis=-1, keepdims=True), approx=True)

    attn_ref[0] = p.astype(attn_ref.dtype)
    ctx = lax.dot_general(p.astype(v.dtype), v, (((2,), (1,)), ((0,), (0,))),
                          preferred_element_type=jnp.float32)        # [H, tq, dv]
    ctx_ref[0] = ctx.astype(ctx_ref.dtype)


# ----------------------------- Pallas wrappers -----------------------------

def pallas_proj(x2d, w_bf16, b):
    """y = x @ W + b  (bf16 output, full-lane-width store). Split columns in XLA."""
    m, din = x2d.shape
    dtot = w_bf16.shape[1]
    tm, m_pad = _row_tile_and_pad(m)
    xp = _pad_rows(x2d, m_pad)
    y = pl.pallas_call(
        _proj_kernel,
        grid=(m_pad // tm,),
        in_specs=[
            pl.BlockSpec((tm, din), lambda i: (i, 0)),
            pl.BlockSpec((din, dtot), lambda i: (0, 0)),
            pl.BlockSpec((1, dtot), lambda i: (0, 0)),
        ],
        out_specs=pl.BlockSpec((tm, dtot), lambda i: (i, 0)),
        out_shape=jax.ShapeDtypeStruct((m_pad, dtot), jnp.bfloat16),
        compiler_params=_cparams("parallel"),
    )(xp, w_bf16, b)
    return y[:m]


def pallas_outproj_add_ln(ctx2d_bf16, wo, bo, res2d, gamma, beta):
    m, din = ctx2d_bf16.shape
    dout = wo.shape[1]
    tm, m_pad = _row_tile_and_pad(m)
    xp = _pad_rows(ctx2d_bf16, m_pad)
    rp = _pad_rows(res2d, m_pad)
    out = pl.pallas_call(
        _outproj_add_ln_kernel,
        grid=(m_pad // tm,),
        in_specs=[
            pl.BlockSpec((tm, din), lambda i: (i, 0)),
            pl.BlockSpec((din, dout), lambda i: (0, 0)),
            pl.BlockSpec((1, dout), lambda i: (0, 0)),
            pl.BlockSpec((tm, dout), lambda i: (i, 0)),
            pl.BlockSpec((1, dout), lambda i: (0, 0)),
            pl.BlockSpec((1, dout), lambda i: (0, 0)),
        ],
        out_specs=pl.BlockSpec((tm, dout), lambda i: (i, 0)),
        out_shape=jax.ShapeDtypeStruct((m_pad, dout), jnp.float32),
        compiler_params=_cparams("parallel"),
    )(xp, wo, bo, rp, gamma, beta)
    return out[:m]


def pallas_ffn_add_ln(x2d, w1, b1, w2, b2, gamma, beta):
    m, d = x2d.shape
    d_inner = w1.shape[1]
    tm, m_pad = _row_tile_and_pad(m)
    xp = _pad_rows(x2d, m_pad)
    out = pl.pallas_call(
        _ffn_add_ln_kernel,
        grid=(m_pad // tm,),
        in_specs=[
            pl.BlockSpec((tm, d), lambda i: (i, 0)),
            pl.BlockSpec((d, d_inner), lambda i: (0, 0)),
            pl.BlockSpec((1, d_inner), lambda i: (0, 0)),
            pl.BlockSpec((d_inner, d), lambda i: (0, 0)),
            pl.BlockSpec((1, d), lambda i: (0, 0)),
            pl.BlockSpec((1, d), lambda i: (0, 0)),
            pl.BlockSpec((1, d), lambda i: (0, 0)),
        ],
        out_specs=pl.BlockSpec((tm, d), lambda i: (i, 0)),
        out_shape=jax.ShapeDtypeStruct((m_pad, d), jnp.float32),
        compiler_params=_cparams("parallel"),
    )(xp, w1, b1, w2, b2, gamma, beta)
    return out[:m]


def pallas_attention(q, k, v, mask, *, attn_dtype=jnp.bfloat16):
    # q: [B, H, Lq, dk] bf16, k: [B, H, Lk, dk] bf16, v: [B, H, Lk, dv] bf16
    # mask: [B, Lq, Lk] (any dtype; nonzero = keep) or None
    b, h, lq, dk = q.shape
    lk = k.shape[2]
    dv = v.shape[3]
    tq = _seq_tile(lq)
    has_mask = mask is not None
    kernel = functools.partial(_attn_kernel, has_mask=has_mask)

    in_specs = [
        pl.BlockSpec((1, h, tq, dk), lambda bi, qi: (bi, 0, qi, 0)),
        pl.BlockSpec((1, h, lk, dk), lambda bi, qi: (bi, 0, 0, 0)),
        pl.BlockSpec((1, h, lk, dv), lambda bi, qi: (bi, 0, 0, 0)),
    ]
    args = [q, k, v]
    if has_mask:
        in_specs.append(pl.BlockSpec((1, tq, lk), lambda bi, qi: (bi, qi, 0)))
        args.append((mask != 0).astype(jnp.int8))

    attn, ctx = pl.pallas_call(
        kernel,
        grid=(b, lq // tq),
        in_specs=in_specs,
        out_specs=(
            pl.BlockSpec((1, h, tq, lk), lambda bi, qi: (bi, 0, qi, 0)),
            pl.BlockSpec((1, h, tq, dv), lambda bi, qi: (bi, 0, qi, 0)),
        ),
        out_shape=(
            jax.ShapeDtypeStruct((b, h, lq, lk), attn_dtype),
            jax.ShapeDtypeStruct((b, h, lq, dv), jnp.bfloat16),
        ),
        compiler_params=_cparams("parallel", "parallel"),
    )(*args)
    return attn, ctx


# ----------------------------- Model pieces -----------------------------

def multi_head_attention(p, q_in, kv_in, mask, *, n_head, d_k, d_v, self_attn):
    b, lq, d = q_in.shape
    lk = kv_in.shape[1]
    q2 = q_in.reshape(b * lq, d)          # residual source (f32)
    kv2 = kv_in.reshape(b * lk, d)

    if self_attn:
        qkv = pallas_proj(q2, p["w_qkv"], p["b_qkv"])        # [B*Lq, H*(dk+dk+dv)] bf16
        q = qkv[:, : n_head * d_k]
        k = qkv[:, n_head * d_k: 2 * n_head * d_k]
        v = qkv[:, 2 * n_head * d_k:]
    else:
        q = pallas_proj(q2, p["w_q"], p["b_q"])               # [B*Lq, H*dk] bf16
        kv = pallas_proj(kv2, p["w_kv"], p["b_kv"])           # [B*Lk, H*(dk+dv)] bf16
        k = kv[:, : n_head * d_k]
        v = kv[:, n_head * d_k:]

    # Head-major layout for the batched attention matmuls (cheap bf16 XLA copies;
    # keeps the Pallas kernel free of sub-lane slices / masked partial stores).
    q = q.reshape(b, lq, n_head, d_k).transpose(0, 2, 1, 3)
    k = k.reshape(b, lk, n_head, d_k).transpose(0, 2, 1, 3)
    v = v.reshape(b, lk, n_head, d_v).transpose(0, 2, 1, 3)

    attn, ctx = pallas_attention(q, k, v, mask)

    ctx2 = ctx.transpose(0, 2, 1, 3).reshape(b * lq, n_head * d_v)   # bf16 slab
    out = pallas_outproj_add_ln(ctx2, p["wo"], p["bo"], q2, p["ln_g"], p["ln_b"])
    return out.reshape(b, lq, d), attn


def positionwise_ffn(p, x):
    b, l, d = x.shape
    x2 = x.reshape(b * l, d)
    out = pallas_ffn_add_ln(x2, p["w1"], p["b1"], p["w2"], p["b2"],
                            p["ln_g"], p["ln_b"])
    return out.reshape(b, l, d)


def decoder_layer(params, dec_input, enc_output,
                  slf_attn_mask=None, dec_enc_attn_mask=None,
                  *, n_head, d_k, d_v):
    x, dec_slf_attn = multi_head_attention(
        params["slf_attn"], dec_input, dec_input, slf_attn_mask,
        n_head=n_head, d_k=d_k, d_v=d_v, self_attn=True)
    x, dec_enc_attn = multi_head_attention(
        params["enc_attn"], x, enc_output, dec_enc_attn_mask,
        n_head=n_head, d_k=d_k, d_v=d_v, self_attn=False)
    x = positionwise_ffn(params["pos_ffn"], x)
    return x, dec_slf_attn, dec_enc_attn


# ----------------------------- Param init -----------------------------

def _init_mha_params(key, d_model, n_head, d_k, d_v, *, fused_qkv):
    ks = jax.random.split(key, 4)
    s = 1.0 / math.sqrt(d_model)
    q_scale = 1.0 / math.sqrt(d_k)   # softmax temperature folded into W_q (and b_q)
    wq = jax.random.normal(ks[0], (d_model, n_head * d_k), jnp.float32) * s * q_scale
    wk = jax.random.normal(ks[1], (d_model, n_head * d_k), jnp.float32) * s
    wv = jax.random.normal(ks[2], (d_model, n_head * d_v), jnp.float32) * s
    wo = jax.random.normal(ks[3], (n_head * d_v, d_model), jnp.float32) * s
    # NOTE: if loading real checkpoints, b_q must also be multiplied by q_scale.
    p = {
        "wo": wo.astype(jnp.bfloat16),
        "bo": jnp.zeros((1, d_model), jnp.float32),
        "ln_g": jnp.ones((1, d_model), jnp.float32),
        "ln_b": jnp.zeros((1, d_model), jnp.float32),
    }
    if fused_qkv:
        p["w_qkv"] = jnp.concatenate([wq, wk, wv], axis=1).astype(jnp.bfloat16)
        p["b_qkv"] = jnp.zeros((1, 2 * n_head * d_k + n_head * d_v), jnp.float32)
    else:
        p["w_q"] = wq.astype(jnp.bfloat16)
        p["b_q"] = jnp.zeros((1, n_head * d_k), jnp.float32)
        p["w_kv"] = jnp.concatenate([wk, wv], axis=1).astype(jnp.bfloat16)
        p["b_kv"] = jnp.zeros((1, n_head * d_k + n_head * d_v), jnp.float32)
    return p


def _init_ffn_params(key, d_model, d_inner):
    k1, k2 = jax.random.split(key)
    return {
        "w1": (jax.random.normal(k1, (d_model, d_inner), jnp.float32)
               / math.sqrt(d_model)).astype(jnp.bfloat16),
        "b1": jnp.zeros((1, d_inner), jnp.float32),
        "w2": (jax.random.normal(k2, (d_inner, d_model), jnp.float32)
               / math.sqrt(d_inner)).astype(jnp.bfloat16),
        "b2": jnp.zeros((1, d_model), jnp.float32),
        "ln_g": jnp.ones((1, d_model), jnp.float32),
        "ln_b": jnp.zeros((1, d_model), jnp.float32),
    }


def init_decoder_layer_params(key, d_model, d_inner, n_head, d_k, d_v):
    k1, k2, k3 = jax.random.split(key, 3)
    return {
        "slf_attn": _init_mha_params(k1, d_model, n_head, d_k, d_v, fused_qkv=True),
        "enc_attn": _init_mha_params(k2, d_model, n_head, d_k, d_v, fused_qkv=False),
        "pos_ffn": _init_ffn_params(k3, d_model, d_inner),
    }


# ----------------------------- Main -----------------------------

if __name__ == "__main__":
    B, L_DEC, L_ENC = 2, 8, 8
    D_MODEL, D_INNER = 32, 64
    N_HEAD, D_K, D_V = 4, 8, 8

    root = jax.random.PRNGKey(0)
    k_params, k_dec, k_enc = jax.random.split(root, 3)

    params = init_decoder_layer_params(k_params, D_MODEL, D_INNER, N_HEAD, D_K, D_V)
    dec_input = jax.random.normal(k_dec, (B, L_DEC, D_MODEL), jnp.float32)
    enc_output = jax.random.normal(k_enc, (B, L_ENC, D_MODEL), jnp.float32)

    fwd = jax.jit(functools.partial(decoder_layer,
                                    n_head=N_HEAD, d_k=D_K, d_v=D_V))

    # Run 1: no masks (matches module defaults).
    dec_out, slf_attn, enc_attn = fwd(params, dec_input, enc_output, None, None)
    jax.block_until_ready((dec_out, slf_attn, enc_attn))

    assert dec_out.shape == (B, L_DEC, D_MODEL)
    assert slf_attn.shape == (B, N_HEAD, L_DEC, L_DEC)
    assert enc_attn.shape == (B, N_HEAD, L_DEC, L_ENC)
    assert bool(jnp.all(jnp.isfinite(dec_out)))
    # softmax rows sum to ~1 (bf16 probs + approx reciprocal => looser tolerance)
    assert bool(jnp.allclose(jnp.sum(slf_attn.astype(jnp.float32), -1), 1.0, atol=1e-2))
    assert bool(jnp.allclose(jnp.sum(enc_attn.astype(jnp.float32), -1), 1.0, atol=1e-2))

    # Run 2: causal self-attn mask + all-ones enc mask (exercises masked path).
    causal = jnp.broadcast_to(jnp.tril(jnp.ones((L_DEC, L_DEC), jnp.float32)),
                              (B, L_DEC, L_DEC))
    enc_mask = jnp.ones((B, L_DEC, L_ENC), jnp.float32)
    dec_out_m, slf_attn_m, enc_attn_m = fwd(params, dec_input, enc_output,
                                            causal, enc_mask)
    jax.block_until_ready((dec_out_m, slf_attn_m, enc_attn_m))
    assert bool(jnp.all(jnp.isfinite(dec_out_m)))
    future = jnp.triu(jnp.ones((L_DEC, L_DEC), jnp.float32), k=1)[None, None]
    assert bool(jnp.max(slf_attn_m.astype(jnp.float32) * future) < 1e-6)

    print("KERNEL_OK")
</pallas_src>

<mosaic_0001>
module attributes {stable_mosaic.version = 11 : i64} {
  func.func @_proj_kernel(%arg0: i32, %arg1: memref<16x32xf32, #tpu.memory_space<vmem>>, %arg2: memref<32x64xbf16, #tpu.memory_space<vmem>>, %arg3: memref<1x64xf32, #tpu.memory_space<vmem>>, %arg4: memref<16x64xbf16, #tpu.memory_space<vmem>>) attributes {dimension_semantics = [#tpu.dimension_semantics<parallel>], iteration_bounds = array<i64: 1>, scalar_prefetch = 0 : i64, scratch_operands = 0 : i64, tpu.core_type = #tpu.core_type<tc>, window_params = [{transform_indices = @transform_0, window_bounds = array<i64: 16, 32>}, {pipeline_mode = #tpu.pipeline_mode<synchronous>, transform_indices = @transform_1, window_bounds = array<i64: 32, 64>}, {pipeline_mode = #tpu.pipeline_mode<synchronous>, transform_indices = @transform_2, window_bounds = array<i64: 1, 64>}, {transform_indices = @transform_3, window_bounds = array<i64: 16, 64>}]} {
    %c0 = arith.constant 0 : index
    %c0_0 = arith.constant 0 : index
    %0 = vector.load %arg1[%c0, %c0_0] : memref<16x32xf32, #tpu.memory_space<vmem>>, vector<16x32xf32>
    %1 = arith.truncf %0 : vector<16x32xf32> to vector<16x32xbf16>
    %c0_1 = arith.constant 0 : index
    %c0_2 = arith.constant 0 : index
    %2 = vector.load %arg2[%c0_1, %c0_2] : memref<32x64xbf16, #tpu.memory_space<vmem>>, vector<32x64xbf16>
    %cst = arith.constant dense<0.000000e+00> : vector<16x64xf32>
    %3 = tpu.matmul %1, %2, %cst {dimension_numbers = #tpu.dot_dimension_numbers<[1], [0], [0], [1], [0, 0, 1, 1], [], []>} : vector<16x32xbf16>, vector<32x64xbf16>, vector<16x64xf32> -> vector<16x64xf32>
    %c0_3 = arith.constant 0 : index
    %c0_4 = arith.constant 0 : index
    %4 = vector.load %arg3[%c0_3, %c0_4] : memref<1x64xf32, #tpu.memory_space<vmem>>, vector<1x64xf32>
    %5 = vector.broadcast %4 : vector<1x64xf32> to vector<16x64xf32>
    %6 = arith.addf %3, %5 : vector<16x64xf32>
    %7 = arith.truncf %6 : vector<16x64xf32> to vector<16x64xbf16>
    %c0_5 = arith.constant 0 : index
    %c0_6 = arith.constant 0 : index
    %8 = vector.load %arg4[%c0_5, %c0_6] : memref<16x64xbf16, #tpu.memory_space<vmem>>, vector<16x64xbf16>
    tpu.vector_store %arg4[%c0_5, %c0_6], %7 {strides = array<i32>} : memref<16x64xbf16, #tpu.memory_space<vmem>>, vector<16x64xbf16>,
    return
  }
  func.func @transform_0(%arg0: i32) -> (i32, i32) {
    %c0_i32 = arith.constant 0 : i32
    %c0_i32_0 = arith.constant 0 : i32
    return %arg0, %c0_i32 : i32, i32
  }
  func.func @transform_1(%arg0: i32) -> (i32, i32) {
    %c0_i32 = arith.constant 0 : i32
    %c0_i32_0 = arith.constant 0 : i32
    %c0_i32_1 = arith.constant 0 : i32
    return %c0_i32, %c0_i32_0 : i32, i32
  }
  func.func @transform_2(%arg0: i32) -> (i32, i32) {
    %c0_i32 = arith.constant 0 : i32
    %c0_i32_0 = arith.constant 0 : i32
    %c0_i32_1 = arith.constant 0 : i32
    return %c0_i32, %c0_i32_0 : i32, i32
  }
  func.func @transform_3(%arg0: i32) -> (i32, i32) {
    %c0_i32 = arith.constant 0 : i32
    %c0_i32_0 = arith.constant 0 : i32
    return %arg0, %c0_i32 : i32, i32
  }
}

module attributes {stable_mosaic.version = 11 : i64} {
  func.func @_proj_kernel(%arg0: i32, %arg1: memref<16x32xf32, #tpu.memory_space<vmem>>, %arg2: memref<32x96xbf16, #tpu.memory_space<vmem>>, %arg3: memref<1x96xf32, #tpu.memory_space<vmem>>, %arg4: memref<16x96xbf16, #tpu.memory_space<vmem>>) attributes {dimension_semantics = [#tpu.dimension_semantics<parallel>], iteration_bounds = array<i64: 1>, scalar_prefetch = 0 : i64, scratch_operands = 0 : i64, tpu.core_type = #tpu.core_type<tc>, window_params = [{transform_indices = @transform_0, window_bounds = array<i64: 16, 32>}, {pipeline_mode = #tpu.pipeline_mode<synchronous>, transform_indices = @transform_1, window_bounds = array<i64: 32, 96>}, {pipeline_mode = #tpu.pipeline_mode<synchronous>, transform_indices = @transform_2, window_bounds = array<i64: 1, 96>}, {transform_indices = @transform_3, window_bounds = array<i64: 16, 96>}]} {
    %c0 = arith.constant 0 : index
    %c0_0 = arith.constant 0 : index
    %0 = vector.load %arg1[%c0, %c0_0] : memref<16x32xf32, #tpu.memory_space<vmem>>, vector<16x32xf32>
    %1 = arith.truncf %0 : vector<16x32xf32> to vector<16x32xbf16>
    %c0_1 = arith.constant 0 : index
    %c0_2 = arith.constant 0 : index
    %2 = vector.load %arg2[%c0_1, %c0_2] : memref<32x96xbf16, #tpu.memory_space<vmem>>, vector<32x96xbf16>
    %cst = arith.constant dense<0.000000e+00> : vector<16x96xf32>
    %3 = tpu.matmul %1, %2, %cst {dimension_numbers = #tpu.dot_dimension_numbers<[1], [0], [0], [1], [0, 0, 1, 1], [], []>} : vector<16x32xbf16>, vector<32x96xbf16>, vector<16x96xf32> -> vector<16x96xf32>
    %c0_3 = arith.constant 0 : index
    %c0_4 = arith.constant 0 : index
    %4 = vector.load %arg3[%c0_3, %c0_4] : memref<1x96xf32, #tpu.memory_space<vmem>>, vector<1x96xf32>
    %5 = vector.broadcast %4 : vector<1x96xf32> to vector<16x96xf32>
    %6 = arith.addf %3, %5 : vector<16x96xf32>
    %7 = arith.truncf %6 : vector<16x96xf32> to vector<16x96xbf16>
    %c0_5 = arith.constant 0 : index
    %c0_6 = arith.constant 0 : index
    %8 = vector.load %arg4[%c0_5, %c0_6] : memref<16x96xbf16, #tpu.memory_space<vmem>>, vector<16x96xbf16>
    tpu.vector_store %arg4[%c0_5, %c0_6], %7 {strides = array<i32>} : memref<16x96xbf16, #tpu.memory_space<vmem>>, vector<16x96xbf16>,
    return
  }
  func.func @transform_0(%arg0: i32) -> (i32, i32) {
    %c0_i32 = arith.constant 0 : i32
    %c0_i32_0 = arith.constant 0 : i32
    return %arg0, %c0_i32 : i32, i32
  }
  func.func @transform_1(%arg0: i32) -> (i32, i32) {
    %c0_i32 = arith.constant 0 : i32
    %c0_i32_0 = arith.constant 0 : i32
    %c0_i32_1 = arith.constant 0 : i32
    return %c0_i32, %c0_i32_0 : i32, i32
  }
  func.func @transform_2(%arg0: i32) -> (i32, i32) {
    %c0_i32 = arith.constant 0 : i32
    %c0_i32_0 = arith.constant 0 : i32
    %c0_i32_1 = arith.constant 0 : i32
    return %c0_i32, %c0_i32_0 : i32, i32
  }
  func.func @transform_3(%arg0: i32) -> (i32, i32) {
    %c0_i32 = arith.constant 0 : i32
    %c0_i32_0 = arith.constant 0 : i32
    return %arg0, %c0_i32 : i32, i32
  }
}

module attributes {stable_mosaic.version = 11 : i64} {
  func.func @_attn_kernel(%arg0: i32, %arg1: i32, %arg2: memref<1x4x8x8xbf16, #tpu.memory_space<vmem>>, %arg3: memref<1x4x8x8xbf16, #tpu.memory_space<vmem>>, %arg4: memref<1x4x8x8xbf16, #tpu.memory_space<vmem>>, %arg5: memref<1x4x8x8xbf16, #tpu.memory_space<vmem>>, %arg6: memref<1x4x8x8xbf16, #tpu.memory_space<vmem>>) attributes {dimension_semantics = [#tpu.dimension_semantics<parallel>, #tpu.dimension_semantics<parallel>], iteration_bounds = array<i64: 2, 1>, scalar_prefetch = 0 : i64, scratch_operands = 0 : i64, tpu.core_type = #tpu.core_type<tc>, window_params = [{transform_indices = @transform_0, window_bounds = array<i64: 1, 4, 8, 8>}, {transform_indices = @transform_1, window_bounds = array<i64: 1, 4, 8, 8>}, {transform_indices = @transform_2, window_bounds = array<i64: 1, 4, 8, 8>}, {transform_indices = @transform_3, window_bounds = array<i64: 1, 4, 8, 8>}, {transform_indices = @transform_4, window_bounds = array<i64: 1, 4, 8, 8>}]} {
    %c0 = arith.constant 0 : index
    %c0_0 = arith.constant 0 : index
    %c0_1 = arith.constant 0 : index
    %c0_2 = arith.constant 0 : index
    %0 = vector.load %arg2[%c0, %c0_0, %c0_1, %c0_2] : memref<1x4x8x8xbf16, #tpu.memory_space<vmem>>, vector<1x4x8x8xbf16>
    %1 = vector.shape_cast %0 : vector<1x4x8x8xbf16> to vector<4x8x8xbf16>
    %c0_3 = arith.constant 0 : index
    %c0_4 = arith.constant 0 : index
    %c0_5 = arith.constant 0 : index
    %c0_6 = arith.constant 0 : index
    %2 = vector.load %arg3[%c0_3, %c0_4, %c0_5, %c0_6] : memref<1x4x8x8xbf16, #tpu.memory_space<vmem>>, vector<1x4x8x8xbf16>
    %3 = vector.shape_cast %2 : vector<1x4x8x8xbf16> to vector<4x8x8xbf16>
    %c0_7 = arith.constant 0 : index
    %c0_8 = arith.constant 0 : index
    %c0_9 = arith.constant 0 : index
    %c0_10 = arith.constant 0 : index
    %4 = vector.load %arg4[%c0_7, %c0_8, %c0_9, %c0_10] : memref<1x4x8x8xbf16, #tpu.memory_space<vmem>>, vector<1x4x8x8xbf16>
    %5 = vector.shape_cast %4 : vector<1x4x8x8xbf16> to vector<4x8x8xbf16>
    %cst = arith.constant dense<0.000000e+00> : vector<4x8x8xf32>
    %6 = tpu.matmul %1, %3, %cst {dimension_numbers = #tpu.dot_dimension_numbers<[2], [2], [1], [1], [0, 0, 0, 1, 1, 1], [0], [0]>} : vector<4x8x8xbf16>, vector<4x8x8xbf16>, vector<4x8x8xf32> -> vector<4x8x8xf32>
    %cst_11 = arith.constant dense<0xFF800000> : vector<4x8xf32>
    %7 = vector.multi_reduction <maximumf>, %6, %cst_11 [2] : vector<4x8x8xf32> to vector<4x8xf32>
    %8 = vector.shape_cast %7 : vector<4x8xf32> to vector<4x8x1xf32>
    %9 = vector.broadcast %8 : vector<4x8x1xf32> to vector<4x8x8xf32>
    %10 = arith.subf %6, %9 : vector<4x8x8xf32>
    %11 = math.exp %10 : vector<4x8x8xf32>
    %cst_12 = arith.constant dense<0.000000e+00> : vector<4x8xf32>
    %12 = vector.multi_reduction <add>, %11, %cst_12 [2] : vector<4x8x8xf32> to vector<4x8xf32>
    %13 = vector.shape_cast %12 : vector<4x8xf32> to vector<4x8x1xf32>
    %14 = tpu.reciprocal %13 {approx = true} : vector<4x8x1xf32> -> vector<4x8x1xf32>
    %15 = vector.broadcast %14 : vector<4x8x1xf32> to vector<4x8x8xf32>
    %16 = arith.mulf %11, %15 : vector<4x8x8xf32>
    %17 = arith.truncf %16 : vector<4x8x8xf32> to vector<4x8x8xbf16>
    %c0_13 = arith.constant 0 : index
    %c0_14 = arith.constant 0 : index
    %c0_15 = arith.constant 0 : index
    %c0_16 = arith.constant 0 : index
    %18 = vector.load %arg5[%c0_13, %c0_14, %c0_15, %c0_16] : memref<1x4x8x8xbf16, #tpu.memory_space<vmem>>, vector<1x4x8x8xbf16>
    %19 = vector.shape_cast %18 : vector<1x4x8x8xbf16> to vector<4x8x8xbf16>
    %20 = vector.shape_cast %17 : vector<4x8x8xbf16> to vector<1x4x8x8xbf16>
    tpu.vector_store %arg5[%c0_13, %c0_14, %c0_15, %c0_16], %20 {strides = array<i32>} : memref<1x4x8x8xbf16, #tpu.memory_space<vmem>>, vector<1x4x8x8xbf16>,
    %21 = arith.truncf %16 : vector<4x8x8xf32> to vector<4x8x8xbf16>
    %cst_17 = arith.constant dense<0.000000e+00> : vector<4x8x8xf32>
    %22 = tpu.matmul %21, %5, %cst_17 {dimension_numbers = #tpu.dot_dimension_numbers<[2], [1], [1], [2], [0, 0, 0, 1, 1, 2], [0], [0]>} : vector<4x8x8xbf16>, vector<4x8x8xbf16>, vector<4x8x8xf32> -> vector<4x8x8xf32>
    %23 = arith.truncf %22 : vector<4x8x8xf32> to vector<4x8x8xbf16>
    %c0_18 = arith.constant 0 : index
    %c0_19 = arith.constant 0 : index
    %c0_20 = arith.constant 0 : index
    %c0_21 = arith.constant 0 : index
    %24 = vector.load %arg6[%c0_18, %c0_19, %c0_20, %c0_21] : memref<1x4x8x8xbf16, #tpu.memory_space<vmem>>, vector<1x4x8x8xbf16>
    %25 = vector.shape_cast %24 : vector<1x4x8x8xbf16> to vector<4x8x8xbf16>
    %26 = vector.shape_cast %23 : vector<4x8x8xbf16> to vector<1x4x8x8xbf16>
    tpu.vector_store %arg6[%c0_18, %c0_19, %c0_20, %c0_21], %26 {strides = array<i32>} : memref<1x4x8x8xbf16, #tpu.memory_space<vmem>>, vector<1x4x8x8xbf16>,
    return
  }
  func.func @transform_0(%arg0: i32, %arg1: i32) -> (i32, i32, i32, i32) {
    %c0_i32 = arith.constant 0 : i32
    %c0_i32_0 = arith.constant 0 : i32
    %c0_i32_1 = arith.constant 0 : i32
    return %arg0, %c0_i32, %arg1, %c0_i32_0 : i32, i32, i32, i32
  }
  func.func @transform_1(%arg0: i32, %arg1: i32) -> (i32, i32, i32, i32) {
    %c0_i32 = arith.constant 0 : i32
    %c0_i32_0 = arith.constant 0 : i32
    %c0_i32_1 = arith.constant 0 : i32
    %c0_i32_2 = arith.constant 0 : i32
    return %arg0, %c0_i32, %c0_i32_0, %c0_i32_1 : i32, i32, i32, i32
  }
  func.func @transform_2(%arg0: i32, %arg1: i32) -> (i32, i32, i32, i32) {
    %c0_i32 = arith.constant 0 : i32
    %c0_i32_0 = arith.constant 0 : i32
    %c0_i32_1 = arith.constant 0 : i32
    %c0_i32_2 = arith.constant 0 : i32
    return %arg0, %c0_i32, %c0_i32_0, %c0_i32_1 : i32, i32, i32, i32
  }
  func.func @transform_3(%arg0: i32, %arg1: i32) -> (i32, i32, i32, i32) {
    %c0_i32 = arith.constant 0 : i32
    %c0_i32_0 = arith.constant 0 : i32
    %c0_i32_1 = arith.constant 0 : i32
    return %arg0, %c0_i32, %arg1, %c0_i32_0 : i32, i32, i32, i32
  }
  func.func @transform_4(%arg0: i32, %arg1: i32) -> (i32, i32, i32, i32) {
    %c0_i32 = arith.constant 0 : i32
    %c0_i32_0 = arith.constant 0 : i32
    %c0_i32_1 = arith.constant 0 : i32
    return %arg0, %c0_i32, %arg1, %c0_i32_0 : i32, i32, i32, i32
  }
}

module attributes {stable_mosaic.version = 11 : i64} {
  func.func @_outproj_add_ln_kernel(%arg0: i32, %arg1: memref<16x32xbf16, #tpu.memory_space<vmem>>, %arg2: memref<32x32xbf16, #tpu.memory_space<vmem>>, %arg3: memref<1x32xf32, #tpu.memory_space<vmem>>, %arg4: memref<16x32xf32, #tpu.memory_space<vmem>>, %arg5: memref<1x32xf32, #tpu.memory_space<vmem>>, %arg6: memref<1x32xf32, #tpu.memory_space<vmem>>, %arg7: memref<16x32xf32, #tpu.memory_space<vmem>>) attributes {dimension_semantics = [#tpu.dimension_semantics<parallel>], iteration_bounds = array<i64: 1>, scalar_prefetch = 0 : i64, scratch_operands = 0 : i64, tpu.core_type = #tpu.core_type<tc>, window_params = [{transform_indices = @transform_0, window_bounds = array<i64: 16, 32>}, {pipeline_mode = #tpu.pipeline_mode<synchronous>, transform_indices = @transform_1, window_bounds = array<i64: 32, 32>}, {pipeline_mode = #tpu.pipeline_mode<synchronous>, transform_indices = @transform_2, window_bounds = array<i64: 1, 32>}, {transform_indices = @transform_3, window_bounds = array<i64: 16, 32>}, {pipeline_mode = #tpu.pipeline_mode<synchronous>, transform_indices = @transform_4, window_bounds = array<i64: 1, 32>}, {pipeline_mode = #tpu.pipeline_mode<synchronous>, transform_indices = @transform_5, window_bounds = array<i64: 1, 32>}, {transform_indices = @transform_6, window_bounds = array<i64: 16, 32>}]} {
    %c0 = arith.constant 0 : index
    %c0_0 = arith.constant 0 : index
    %0 = vector.load %arg1[%c0, %c0_0] : memref<16x32xbf16, #tpu.memory_space<vmem>>, vector<16x32xbf16>
    %c0_1 = arith.constant 0 : index
    %c0_2 = arith.constant 0 : index
    %1 = vector.load %arg2[%c0_1, %c0_2] : memref<32x32xbf16, #tpu.memory_space<vmem>>, vector<32x32xbf16>
    %cst = arith.constant dense<0.000000e+00> : vector<16x32xf32>
    %2 = tpu.matmul %0, %1, %cst {dimension_numbers = #tpu.dot_dimension_numbers<[1], [0], [0], [1], [0, 0, 1, 1], [], []>} : vector<16x32xbf16>, vector<32x32xbf16>, vector<16x32xf32> -> vector<16x32xf32>
    %c0_3 = arith.constant 0 : index
    %c0_4 = arith.constant 0 : index
    %3 = vector.load %arg3[%c0_3, %c0_4] : memref<1x32xf32, #tpu.memory_space<vmem>>, vector<1x32xf32>
    %4 = vector.broadcast %3 : vector<1x32xf32> to vector<16x32xf32>
    %5 = arith.addf %2, %4 : vector<16x32xf32>
    %c0_5 = arith.constant 0 : index
    %c0_6 = arith.constant 0 : index
    %6 = vector.load %arg4[%c0_5, %c0_6] : memref<16x32xf32, #tpu.memory_space<vmem>>, vector<16x32xf32>
    %7 = arith.addf %5, %6 : vector<16x32xf32>
    %cst_7 = arith.constant dense<0.000000e+00> : vector<16xf32>
    %8 = vector.multi_reduction <add>, %7, %cst_7 [1] : vector<16x32xf32> to vector<16xf32>
    %9 = vector.shape_cast %8 : vector<16xf32> to vector<16x1xf32>
    %cst_8 = arith.constant 3.200000e+01 : f32
    %10 = vector.broadcast %cst_8 : f32 to vector<16x1xf32>
    %11 = arith.divf %9, %10 : vector<16x1xf32>
    %12 = vector.broadcast %11 : vector<16x1xf32> to vector<16x32xf32>
    %13 = arith.subf %7, %12 : vector<16x32xf32>
    %14 = arith.mulf %13, %13 : vector<16x32xf32>
    %cst_9 = arith.constant dense<0.000000e+00> : vector<16xf32>
    %15 = vector.multi_reduction <add>, %14, %cst_9 [1] : vector<16x32xf32> to vector<16xf32>
    %16 = vector.shape_cast %15 : vector<16xf32> to vector<16x1xf32>
    %cst_10 = arith.constant 3.200000e+01 : f32
    %17 = vector.broadcast %cst_10 : f32 to vector<16x1xf32>
    %18 = arith.divf %16, %17 : vector<16x1xf32>
    %cst_11 = arith.constant 9.99999997E-7 : f32
    %19 = vector.broadcast %cst_11 : f32 to vector<16x1xf32>
    %20 = arith.addf %18, %19 : vector<16x1xf32>
    %21 = math.rsqrt %20 : vector<16x1xf32>
    %22 = vector.broadcast %21 : vector<16x1xf32> to vector<16x32xf32>
    %23 = arith.mulf %13, %22 : vector<16x32xf32>
    %c0_12 = arith.constant 0 : index
    %c0_13 = arith.constant 0 : index
    %24 = vector.load %arg5[%c0_12, %c0_13] : memref<1x32xf32, #tpu.memory_space<vmem>>, vector<1x32xf32>
    %25 = vector.broadcast %24 : vector<1x32xf32> to vector<16x32xf32>
    %26 = arith.mulf %23, %25 : vector<16x32xf32>
    %c0_14 = arith.constant 0 : index
    %c0_15 = arith.constant 0 : index
    %27 = vector.load %arg6[%c0_14, %c0_15] : memref<1x32xf32, #tpu.memory_space<vmem>>, vector<1x32xf32>
    %28 = vector.broadcast %27 : vector<1x32xf32> to vector<16x32xf32>
    %29 = arith.addf %26, %28 : vector<16x32xf32>
    %c0_16 = arith.constant 0 : index
    %c0_17 = arith.constant 0 : index
    %30 = vector.load %arg7[%c0_16, %c0_17] : memref<16x32xf32, #tpu.memory_space<vmem>>, vector<16x32xf32>
    tpu.vector_store %arg7[%c0_16, %c0_17], %29 {strides = array<i32>} : memref<16x32xf32, #tpu.memory_space<vmem>>, vector<16x32xf32>,
    return
  }
  func.func @transform_0(%arg0: i32) -> (i32, i32) {
    %c0_i32 = arith.constant 0 : i32
    %c0_i32_0 = arith.constant 0 : i32
    return %arg0, %c0_i32 : i32, i32
  }
  func.func @transform_1(%arg0: i32) -> (i32, i32) {
    %c0_i32 = arith.constant 0 : i32
    %c0_i32_0 = arith.constant 0 : i32
    %c0_i32_1 = arith.constant 0 : i32
    return %c0_i32, %c0_i32_0 : i32, i32
  }
  func.func @transform_2(%arg0: i32) -> (i32, i32) {
    %c0_i32 = arith.constant 0 : i32
    %c0_i32_0 = arith.constant 0 : i32
    %c0_i32_1 = arith.constant 0 : i32
    return %c0_i32, %c0_i32_0 : i32, i32
  }
  func.func @transform_3(%arg0: i32) -> (i32, i32) {
    %c0_i32 = arith.constant 0 : i32
    %c0_i32_0 = arith.constant 0 : i32
    return %arg0, %c0_i32 : i32, i32
  }
  func.func @transform_4(%arg0: i32) -> (i32, i32) {
    %c0_i32 = arith.constant 0 : i32
    %c0_i32_0 = arith.constant 0 : i32
    %c0_i32_1 = arith.constant 0 : i32
    return %c0_i32, %c0_i32_0 : i32, i32
  }
  func.func @transform_5(%arg0: i32) -> (i32, i32) {
    %c0_i32 = arith.constant 0 : i32
    %c0_i32_0 = arith.constant 0 : i32
    %c0_i32_1 = arith.constant 0 : i32
    return %c0_i32, %c0_i32_0 : i32, i32
  }
  func.func @transform_6(%arg0: i32) -> (i32, i32) {
    %c0_i32 = arith.constant 0 : i32
    %c0_i32_0 = arith.constant 0 : i32
    return %arg0, %c0_i32 : i32, i32
  }
}

module attributes {stable_mosaic.version = 11 : i64} {
  func.func @_proj_kernel(%arg0: i32, %arg1: memref<16x32xf32, #tpu.memory_space<vmem>>, %arg2: memref<32x32xbf16, #tpu.memory_space<vmem>>, %arg3: memref<1x32xf32, #tpu.memory_space<vmem>>, %arg4: memref<16x32xbf16, #tpu.memory_space<vmem>>) attributes {dimension_semantics = [#tpu.dimension_semantics<parallel>], iteration_bounds = array<i64: 1>, scalar_prefetch = 0 : i64, scratch_operands = 0 : i64, tpu.core_type = #tpu.core_type<tc>, window_params = [{transform_indices = @transform_0, window_bounds = array<i64: 16, 32>}, {pipeline_mode = #tpu.pipeline_mode<synchronous>, transform_indices = @transform_1, window_bounds = array<i64: 32, 32>}, {pipeline_mode = #tpu.pipeline_mode<synchronous>, transform_indices = @transform_2, window_bounds = array<i64: 1, 32>}, {transform_indices = @transform_3, window_bounds = array<i64: 16, 32>}]} {
    %c0 = arith.constant 0 : index
    %c0_0 = arith.constant 0 : index
    %0 = vector.load %arg1[%c0, %c0_0] : memref<16x32xf32, #tpu.memory_space<vmem>>, vector<16x32xf32>
    %1 = arith.truncf %0 : vector<16x32xf32> to vector<16x32xbf16>
    %c0_1 = arith.constant 0 : index
    %c0_2 = arith.constant 0 : index
    %2 = vector.load %arg2[%c0_1, %c0_2] : memref<32x32xbf16, #tpu.memory_space<vmem>>, vector<32x32xbf16>
    %cst = arith.constant dense<0.000000e+00> : vector<16x32xf32>
    %3 = tpu.matmul %1, %2, %cst {dimension_numbers = #tpu.dot_dimension_numbers<[1], [0], [0], [1], [0, 0, 1, 1], [], []>} : vector<16x32xbf16>, vector<32x32xbf16>, vector<16x32xf32> -> vector<16x32xf32>
    %c0_3 = arith.constant 0 : index
    %c0_4 = arith.constant 0 : index
    %4 = vector.load %arg3[%c0_3, %c0_4] : memref<1x32xf32, #tpu.memory_space<vmem>>, vector<1x32xf32>
    %5 = vector.broadcast %4 : vector<1x32xf32> to vector<16x32xf32>
    %6 = arith.addf %3, %5 : vector<16x32xf32>
    %7 = arith.truncf %6 : vector<16x32xf32> to vector<16x32xbf16>
    %c0_5 = arith.constant 0 : index
    %c0_6 = arith.constant 0 : index
    %8 = vector.load %arg4[%c0_5, %c0_6] : memref<16x32xbf16, #tpu.memory_space<vmem>>, vector<16x32xbf16>
    tpu.vector_store %arg4[%c0_5, %c0_6], %7 {strides = array<i32>} : memref<16x32xbf16, #tpu.memory_space<vmem>>, vector<16x32xbf16>,
    return
  }
  func.func @transform_0(%arg0: i32) -> (i32, i32) {
    %c0_i32 = arith.constant 0 : i32
    %c0_i32_0 = arith.constant 0 : i32
    return %arg0, %c0_i32 : i32, i32
  }
  func.func @transform_1(%arg0: i32) -> (i32, i32) {
    %c0_i32 = arith.constant 0 : i32
    %c0_i32_0 = arith.constant 0 : i32
    %c0_i32_1 = arith.constant 0 : i32
    return %c0_i32, %c0_i32_0 : i32, i32
  }
  func.func @transform_2(%arg0: i32) -> (i32, i32) {
    %c0_i32 = arith.constant 0 : i32
    %c0_i32_0 = arith.constant 0 : i32
    %c0_i32_1 = arith.constant 0 : i32
    return %c0_i32, %c0_i32_0 : i32, i32
  }
  func.func @transform_3(%arg0: i32) -> (i32, i32) {
    %c0_i32 = arith.constant 0 : i32
    %c0_i32_0 = arith.constant 0 : i32
    return %arg0, %c0_i32 : i32, i32
  }
}

module attributes {stable_mosaic.version = 11 : i64} {
  func.func @_ffn_add_ln_kernel(%arg0: i32, %arg1: memref<16x32xf32, #tpu.memory_space<vmem>>, %arg2: memref<32x64xbf16, #tpu.memory_space<vmem>>, %arg3: memref<1x64xf32, #tpu.memory_space<vmem>>, %arg4: memref<64x32xbf16, #tpu.memory_space<vmem>>, %arg5: memref<1x32xf32, #tpu.memory_space<vmem>>, %arg6: memref<1x32xf32, #tpu.memory_space<vmem>>, %arg7: memref<1x32xf32, #tpu.memory_space<vmem>>, %arg8: memref<16x32xf32, #tpu.memory_space<vmem>>) attributes {dimension_semantics = [#tpu.dimension_semantics<parallel>], iteration_bounds = array<i64: 1>, scalar_prefetch = 0 : i64, scratch_operands = 0 : i64, tpu.core_type = #tpu.core_type<tc>, window_params = [{transform_indices = @transform_0, window_bounds = array<i64: 16, 32>}, {pipeline_mode = #tpu.pipeline_mode<synchronous>, transform_indices = @transform_1, window_bounds = array<i64: 32, 64>}, {pipeline_mode = #tpu.pipeline_mode<synchronous>, transform_indices = @transform_2, window_bounds = array<i64: 1, 64>}, {pipeline_mode = #tpu.pipeline_mode<synchronous>, transform_indices = @transform_3, window_bounds = array<i64: 64, 32>}, {pipeline_mode = #tpu.pipeline_mode<synchronous>, transform_indices = @transform_4, window_bounds = array<i64: 1, 32>}, {pipeline_mode = #tpu.pipeline_mode<synchronous>, transform_indices = @transform_5, window_bounds = array<i64: 1, 32>}, {pipeline_mode = #tpu.pipeline_mode<synchronous>, transform_indices = @transform_6, window_bounds = array<i64: 1, 32>}, {transform_indices = @transform_7, window_bounds = array<i64: 16, 32>}]} {
    %c0 = arith.constant 0 : index
    %c0_0 = arith.constant 0 : index
    %0 = vector.load %arg1[%c0, %c0_0] : memref<16x32xf32, #tpu.memory_space<vmem>>, vector<16x32xf32>
    %1 = arith.truncf %0 : vector<16x32xf32> to vector<16x32xbf16>
    %c0_1 = arith.constant 0 : index
    %c0_2 = arith.constant 0 : index
    %2 = vector.load %arg2[%c0_1, %c0_2] : memref<32x64xbf16, #tpu.memory_space<vmem>>, vector<32x64xbf16>
    %cst = arith.constant dense<0.000000e+00> : vector<16x64xf32>
    %3 = tpu.matmul %1, %2, %cst {dimension_numbers = #tpu.dot_dimension_numbers<[1], [0], [0], [1], [0, 0, 1, 1], [], []>} : vector<16x32xbf16>, vector<32x64xbf16>, vector<16x64xf32> -> vector<16x64xf32>
    %c0_3 = arith.constant 0 : index
    %c0_4 = arith.constant 0 : index
    %4 = vector.load %arg3[%c0_3, %c0_4] : memref<1x64xf32, #tpu.memory_space<vmem>>, vector<1x64xf32>
    %5 = vector.broadcast %4 : vector<1x64xf32> to vector<16x64xf32>
    %6 = arith.addf %3, %5 : vector<16x64xf32>
    %cst_5 = arith.constant 0.000000e+00 : f32
    %7 = vector.broadcast %cst_5 : f32 to vector<16x64xf32>
    %8 = arith.maximumf %6, %7 : vector<16x64xf32>
    %9 = arith.truncf %8 : vector<16x64xf32> to vector<16x64xbf16>
    %c0_6 = arith.constant 0 : index
    %c0_7 = arith.constant 0 : index
    %10 = vector.load %arg4[%c0_6, %c0_7] : memref<64x32xbf16, #tpu.memory_space<vmem>>, vector<64x32xbf16>
    %cst_8 = arith.constant dense<0.000000e+00> : vector<16x32xf32>
    %11 = tpu.matmul %9, %10, %cst_8 {dimension_numbers = #tpu.dot_dimension_numbers<[1], [0], [0], [1], [0, 0, 1, 1], [], []>} : vector<16x64xbf16>, vector<64x32xbf16>, vector<16x32xf32> -> vector<16x32xf32>
    %c0_9 = arith.constant 0 : index
    %c0_10 = arith.constant 0 : index
    %12 = vector.load %arg5[%c0_9, %c0_10] : memref<1x32xf32, #tpu.memory_space<vmem>>, vector<1x32xf32>
    %13 = vector.broadcast %12 : vector<1x32xf32> to vector<16x32xf32>
    %14 = arith.addf %11, %13 : vector<16x32xf32>
    %15 = arith.addf %14, %0 : vector<16x32xf32>
    %cst_11 = arith.constant dense<0.000000e+00> : vector<16xf32>
    %16 = vector.multi_reduction <add>, %15, %cst_11 [1] : vector<16x32xf32> to vector<16xf32>
    %17 = vector.shape_cast %16 : vector<16xf32> to vector<16x1xf32>
    %cst_12 = arith.constant 3.200000e+01 : f32
    %18 = vector.broadcast %cst_12 : f32 to vector<16x1xf32>
    %19 = arith.divf %17, %18 : vector<16x1xf32>
    %20 = vector.broadcast %19 : vector<16x1xf32> to vector<16x32xf32>
    %21 = arith.subf %15, %20 : vector<16x32xf32>
    %22 = arith.mulf %21, %21 : vector<16x32xf32>
    %cst_13 = arith.constant dense<0.000000e+00> : vector<16xf32>
    %23 = vector.multi_reduction <add>, %22, %cst_13 [1] : vector<16x32xf32> to vector<16xf32>
    %24 = vector.shape_cast %23 : vector<16xf32> to vector<16x1xf32>
    %cst_14 = arith.constant 3.200000e+01 : f32
    %25 = vector.broadcast %cst_14 : f32 to vector<16x1xf32>
    %26 = arith.divf %24, %25 : vector<16x1xf32>
    %cst_15 = arith.constant 9.99999997E-7 : f32
    %27 = vector.broadcast %cst_15 : f32 to vector<16x1xf32>
    %28 = arith.addf %26, %27 : vector<16x1xf32>
    %29 = math.rsqrt %28 : vector<16x1xf32>
    %30 = vector.broadcast %29 : vector<16x1xf32> to vector<16x32xf32>
    %31 = arith.mulf %21, %30 : vector<16x32xf32>
    %c0_16 = arith.constant 0 : index
    %c0_17 = arith.constant 0 : index
    %32 = vector.load %arg6[%c0_16, %c0_17] : memref<1x32xf32, #tpu.memory_space<vmem>>, vector<1x32xf32>
    %33 = vector.broadcast %32 : vector<1x32xf32> to vector<16x32xf32>
    %34 = arith.mulf %31, %33 : vector<16x32xf32>
    %c0_18 = arith.constant 0 : index
    %c0_19 = arith.constant 0 : index
    %35 = vector.load %arg7[%c0_18, %c0_19] : memref<1x32xf32, #tpu.memory_space<vmem>>, vector<1x32xf32>
    %36 = vector.broadcast %35 : vector<1x32xf32> to vector<16x32xf32>
    %37 = arith.addf %34, %36 : vector<16x32xf32>
    %c0_20 = arith.constant 0 : index
    %c0_21 = arith.constant 0 : index
    %38 = vector.load %arg8[%c0_20, %c0_21] : memref<16x32xf32, #tpu.memory_space<vmem>>, vector<16x32xf32>
    tpu.vector_store %arg8[%c0_20, %c0_21], %37 {strides = array<i32>} : memref<16x32xf32, #tpu.memory_space<vmem>>, vector<16x32xf32>,
    return
  }
  func.func @transform_0(%arg0: i32) -> (i32, i32) {
    %c0_i32 = arith.constant 0 : i32
    %c0_i32_0 = arith.constant 0 : i32
    return %arg0, %c0_i32 : i32, i32
  }
  func.func @transform_1(%arg0: i32) -> (i32, i32) {
    %c0_i32 = arith.constant 0 : i32
    %c0_i32_0 = arith.constant 0 : i32
    %c0_i32_1 = arith.constant 0 : i32
    return %c0_i32, %c0_i32_0 : i32, i32
  }
  func.func @transform_2(%arg0: i32) -> (i32, i32) {
    %c0_i32 = arith.constant 0 : i32
    %c0_i32_0 = arith.constant 0 : i32
    %c0_i32_1 = arith.constant 0 : i32
    return %c0_i32, %c0_i32_0 : i32, i32
  }
  func.func @transform_3(%arg0: i32) -> (i32, i32) {
    %c0_i32 = arith.constant 0 : i32
    %c0_i32_0 = arith.constant 0 : i32
    %c0_i32_1 = arith.constant 0 : i32
    return %c0_i32, %c0_i32_0 : i32, i32
  }
  func.func @transform_4(%arg0: i32) -> (i32, i32) {
    %c0_i32 = arith.constant 0 : i32
    %c0_i32_0 = arith.constant 0 : i32
    %c0_i32_1 = arith.constant 0 : i32
    return %c0_i32, %c0_i32_0 : i32, i32
  }
  func.func @transform_5(%arg0: i32) -> (i32, i32) {
    %c0_i32 = arith.constant 0 : i32
    %c0_i32_0 = arith.constant 0 : i32
    %c0_i32_1 = arith.constant 0 : i32
    return %c0_i32, %c0_i32_0 : i32, i32
  }
  func.func @transform_6(%arg0: i32) -> (i32, i32) {
    %c0_i32 = arith.constant 0 : i32
    %c0_i32_0 = arith.constant 0 : i32
    %c0_i32_1 = arith.constant 0 : i32
    return %c0_i32, %c0_i32_0 : i32, i32
  }
  func.func @transform_7(%arg0: i32) -> (i32, i32) {
    %c0_i32 = arith.constant 0 : i32
    %c0_i32_0 = arith.constant 0 : i32
    return %arg0, %c0_i32 : i32, i32
  }
}

</mosaic_0001>

<llo_original>
// kernel: decoder_layer.12
$region0: #{decoder_layer.12}
  #allocation0 [shape = 'u32[]', space=smem, size = 0x4, offset = 0x4, fixed_abs, tag = 'smem constant byte address 0x4 - core index']
  #allocation1 [shape = 'u32[144,128]{1,0:T(1,128)}', space=vmem, size = 0x12000, scoped, tag = 'internal scratch']
  %s0 = inlined_call_operand.vmem [shape: f32[16,32], index: 0, kind: input, shape index: {}]
  %s1 = inlined_call_operand.hbm [shape: bf16[32,64], index: 1, kind: input, shape index: {}]
  %s2 = inlined_call_operand.vmem [shape: f32[1,64], index: 2, kind: input, shape index: {}]
  %s3 = inlined_call_operand.vmem [shape: bf16[16,64], index: 3, kind: output, shape index: {}]
  %s4 = sld [smem:[#allocation0]]
  $region26: #{decoder_layer.12} parent=0
    _
  %s6 = ssub.s32 1, %s4
  %s7 = scalar_select 0, %s6, %s4
  $region1: #{decoder_layer.12} parent=0
    #allocation2 [shape = 'u8[8192]{0}', space=vmem, size = 0x2000, scoped, tag = 'input window, operand 1, single buffered']
    #allocation3 [shape = 's32[1]{0}', space=sflag, size = 0x4, scoped, tag = 'scoped memory for decoder_layer.12']
    %8 = vsyncpa [#allocation3], 0
    // Predicated region
    $region2: #{decoder_layer.12} parent=1 // pred_check
      _
    $region3: #{decoder_layer.12} parent=1 // pred_check_branch
      %10 = sbr.rel (0) target = $region5
    $region4: #{decoder_layer.12} parent=1 // pred_region
      _
    $region5: #{decoder_layer.12} parent=1 // pred_fallthru
      _
    // Predicated region
    $region6: #{decoder_layer.12} parent=1 // pred_check
      _
    $region7: #{decoder_layer.12} parent=1 // pred_check_branch
      %12 = sbr.rel (0) target = $region9
    $region8: #{decoder_layer.12} parent=1 // pred_region
      %s14 = ssub.s32 256, 256
      %15 = vsyncadd [#allocation3], %s14
      %s16 = sshll.u32 [#allocation2], 4
      %s17 = int_to_ptr.vmem [resolvable:$true] %s16
      %22 = dma.hbm_to_vmem [thread:$0]  %s1, 256, %s17, [#allocation3], 64, 64, 4
    $region9: #{decoder_layer.12} parent=1 // pred_fallthru
      _
    // Predicated region
    $region10: #{decoder_layer.12} parent=1 // pred_check
      _
    $region11: #{decoder_layer.12} parent=1 // pred_check_branch
      %24 = sbr.rel (0) target = $region13
    $region12: #{decoder_layer.12} parent=1 // pred_region
      _
    $region13: #{decoder_layer.12} parent=1 // pred_fallthru
      _
    // Predicated region
    $region14: #{decoder_layer.12} parent=1 // pred_check
      _
    $region15: #{decoder_layer.12} parent=1 // pred_check_branch
      %26 = sbr.rel (0) target = $region17
    $region16: #{decoder_layer.12} parent=1 // pred_region
      %27 = dma.done [#allocation3], 256
    $region17: #{decoder_layer.12} parent=1 // pred_fallthru
      _
    %v29 = vld [vmem:[%s0] sm:$0xff]
    %v30 = vld [vmem:[%s0 + $0x8] sm:$0xff]
    %v31 = vpack.c.bf16 %v30, %v29
    %v32 = vld [vmem:[#allocation2] sm:$0xf]
    %v33 = vld [vmem:[#allocation2 + $0x4] sm:$0xf]
    %v34 = vld [vmem:[#allocation2 + $0x8] sm:$0xf]
    %v35 = vld [vmem:[#allocation2 + $0xc] sm:$0xf]
    %v36 = vld [vmem:[%s2] sm:$0x1]
    %v38 = vlaneseq
    %v39 = vshrl.u32 %v38, 7
    %v40 = vsub.s32 0, %v39
    %v41 = vrot.slane %v36, %v40
    %v47 = vunpack.c.l.b16 %v32
    %v48 = vunpack.c.l.b16 %v33
    %v49 = vunpack.c.l.b16 %v34
    %v50 = vunpack.c.l.b16 %v35
    %v51 = vpack.c.b16 %v48, %v47
    %v52 = vpack.c.b16 %v50, %v49
    %vm55 = vcmask 261120
    %v57 = vsel %vm55, %v31, 0
    %59 = vmatprep.subr.bf16.mxu0 0
    %60 = vmatpush1.bf16.msra.mxu0 0
    %61 = vmatprep.subr.bf16.mxu0 0
    %62 = vmatpush1.bf16.msra.mxu0 0
    %63 = vmatprep.subr.bf16.mxu0 0
    %64 = vmatpush1.bf16.msra.mxu0 0
    %65 = vmatprep.subr.bf16.mxu0 0
    %66 = vmatpush1.bf16.msra.mxu0 0
    %67 = vmatprep.subr.bf16.mxu0 0
    %68 = vmatpush1.bf16.msra.mxu0 0
    %69 = vmatprep.subr.bf16.mxu0 0
    %70 = vmatpush1.bf16.msra.mxu0 0
    %71 = vmatprep.subr.bf16.mxu0 0
    %72 = vmatpush1.bf16.msra.mxu0 %v52
    %73 = vmatprep.subr.bf16.mxu0 0
    %74 = vmatpush1.bf16.msra.mxu0 %v51
    %75 = vmatprep.subr.bf16.mxu0 0
    %76 = vmatpush2.bf16.msra.mxu0 0
    %77 = vmatprep.subr.bf16.mxu0 0
    %78 = vmatpush2.bf16.msra.mxu0 0
    %79 = vmatprep.subr.bf16.mxu0 0
    %80 = vmatpush2.bf16.msra.mxu0 0
    %81 = vmatprep.subr.bf16.mxu0 0
    %82 = vmatpush2.bf16.msra.mxu0 0
    %83 = vmatprep.subr.bf16.mxu0 0
    %84 = vmatpush2.bf16.msra.mxu0 0
    %85 = vmatprep.subr.bf16.mxu0 0
    %86 = vmatpush2.bf16.msra.mxu0 0
    %87 = vmatprep.subr.bf16.mxu0 0
    %88 = vmatpush2.bf16.msra.mxu0 0
    %89 = vmatprep.subr.bf16.mxu0 0
    %90 = vmatpush2.bf16.msra.mxu0 0
    %91 = vmatprep.mubr.bf16.mxu0 0
    %92 = vmatmul.mubr.bf16.gmra.mxu0 %v57
    %v93 = vpop.f32.mrf.mxu0
    %v94 = vadd.f32 %v41, %v93
    %v95 = vpop.f32.mrf.mxu0
    %v96 = vpop.f32.mrf.mxu0
    %v97 = vadd.f32 %v41, %v96
    %v98 = vpop.f32.mrf.mxu0
    %99 = vdwg.mxu0
    %v100 = vpack.c.bf16 %v97, %v94
    %v102 = vunpack.c.l.b16 %v100
    %v103 = vunpack.c.h.b16 %v100
    %v104 = vpack.c.b16 %v102, %v102
    %v105 = vpack.c.b16 %v103, %v103
    %vm108 = vcmask 519168
    %109 = vst.msk [vmem:[%s3] sm:$0xf] %vm108, %v104
    %110 = vst.msk [vmem:[%s3 + $0x4] sm:$0xf] %vm108, %v105
    // Predicated region
    $region18: #{decoder_layer.12} parent=1 // pred_check
      _
    $region19: #{decoder_layer.12} parent=1 // pred_check_branch
      %112 = sbr.rel (0) target = $region21
    $region20: #{decoder_layer.12} parent=1 // pred_region
      _
    $region21: #{decoder_layer.12} parent=1 // pred_fallthru
      _
    // Predicated region
    $region22: #{decoder_layer.12} parent=1 // pred_check
      _
    $region23: #{decoder_layer.12} parent=1 // pred_check_branch
      %114 = sbr.rel (0) target = $region25
    $region24: #{decoder_layer.12} parent=1 // pred_region
      _
    $region25: #{decoder_layer.12} parent=1 // pred_fallthru
      _
    %115 = vsyncpa [#allocation3], 1

// kernel: decoder_layer.8
$region0: #{decoder_layer.8}
  #allocation0 [shape = 'u32[]', space=smem, size = 0x4, offset = 0x4, fixed_abs, tag = 'smem constant byte address 0x4 - core index']
  #allocation1 [shape = 'u32[144,128]{1,0:T(1,128)}', space=vmem, size = 0x12000, scoped, tag = 'internal scratch']
  %s0 = inlined_call_operand.vmem [shape: f32[16,32], index: 0, kind: input, shape index: {}]
  %s1 = inlined_call_operand.vmem [shape: bf16[32,96], index: 1, kind: input, shape index: {}]
  %s2 = inlined_call_operand.vmem [shape: f32[1,96], index: 2, kind: input, shape index: {}]
  %s3 = inlined_call_operand.vmem [shape: bf16[16,96], index: 3, kind: output, shape index: {}]
  %s4 = sld [smem:[#allocation0]]
  $region22: #{decoder_layer.8} parent=0
    _
  %s6 = ssub.s32 1, %s4
  %s7 = scalar_select 0, %s6, %s4
  // Predicated region
  $region2: #{decoder_layer.8} parent=0 // pred_check
    _
  $region3: #{decoder_layer.8} parent=0 // pred_check_branch
    %9 = sbr.rel (0) target = $region5
  $region4: #{decoder_layer.8} parent=0 // pred_region
    _
  $region5: #{decoder_layer.8} parent=0 // pred_fallthru
    _
  // Predicated region
  $region6: #{decoder_layer.8} parent=0 // pred_check
    _
  $region7: #{decoder_layer.8} parent=0 // pred_check_branch
    %11 = sbr.rel (0) target = $region9
  $region8: #{decoder_layer.8} parent=0 // pred_region
    _
  $region9: #{decoder_layer.8} parent=0 // pred_fallthru
    _
  // Predicated region
  $region10: #{decoder_layer.8} parent=0 // pred_check
    _
  $region11: #{decoder_layer.8} parent=0 // pred_check_branch
    %13 = sbr.rel (0) target = $region13
  $region12: #{decoder_layer.8} parent=0 // pred_region
    _
  $region13: #{decoder_layer.8} parent=0 // pred_fallthru
    _
  %v15 = vld [vmem:[%s0] sm:$0xff]
  %v16 = vld [vmem:[%s0 + $0x8] sm:$0xff]
  %v17 = vpack.c.bf16 %v16, %v15
  %v18 = vld [vmem:[%s1] sm:$0xf]
  %v19 = vld [vmem:[%s1 + $0x4] sm:$0xf]
  %v20 = vld [vmem:[%s1 + $0x8] sm:$0xf]
  %v21 = vld [vmem:[%s1 + $0xc] sm:$0xf]
  %v22 = vld [vmem:[%s2] sm:$0x1]
  %v24 = vlaneseq
  %v25 = vshrl.u32 %v24, 7
  %v26 = vsub.s32 0, %v25
  %v27 = vrot.slane %v22, %v26
  %v33 = vunpack.c.l.b16 %v18
  %v34 = vunpack.c.l.b16 %v19
  %v35 = vunpack.c.l.b16 %v20
  %v36 = vunpack.c.l.b16 %v21
  %v37 = vpack.c.b16 %v34, %v33
  %v38 = vpack.c.b16 %v36, %v35
  %vm41 = vcmask 261120
  %v43 = vsel %vm41, %v17, 0
  %45 = vmatprep.subr.bf16.mxu0 0
  %46 = vmatpush1.bf16.msra.mxu0 0
  %47 = vmatprep.subr.bf16.mxu0 0
  %48 = vmatpush1.bf16.msra.mxu0 0
  %49 = vmatprep.subr.bf16.mxu0 0
  %50 = vmatpush1.bf16.msra.mxu0 0
  %51 = vmatprep.subr.bf16.mxu0 0
  %52 = vmatpush1.bf16.msra.mxu0 0
  %53 = vmatprep.subr.bf16.mxu0 0
  %54 = vmatpush1.bf16.msra.mxu0 0
  %55 = vmatprep.subr.bf16.mxu0 0
  %56 = vmatpush1.bf16.msra.mxu0 0
  %57 = vmatprep.subr.bf16.mxu0 0
  %58 = vmatpush1.bf16.msra.mxu0 %v38
  %59 = vmatprep.subr.bf16.mxu0 0
  %60 = vmatpush1.bf16.msra.mxu0 %v37
  %61 = vmatprep.subr.bf16.mxu0 0
  %62 = vmatpush2.bf16.msra.mxu0 0
  %63 = vmatprep.subr.bf16.mxu0 0
  %64 = vmatpush2.bf16.msra.mxu0 0
  %65 = vmatprep.subr.bf16.mxu0 0
  %66 = vmatpush2.bf16.msra.mxu0 0
  %67 = vmatprep.subr.bf16.mxu0 0
  %68 = vmatpush2.bf16.msra.mxu0 0
  %69 = vmatprep.subr.bf16.mxu0 0
  %70 = vmatpush2.bf16.msra.mxu0 0
  %71 = vmatprep.subr.bf16.mxu0 0
  %72 = vmatpush2.bf16.msra.mxu0 0
  %73 = vmatprep.subr.bf16.mxu0 0
  %74 = vmatpush2.bf16.msra.mxu0 0
  %75 = vmatprep.subr.bf16.mxu0 0
  %76 = vmatpush2.bf16.msra.mxu0 0
  %77 = vmatprep.mubr.bf16.mxu0 0
  %78 = vmatmul.mubr.bf16.gmra.mxu0 %v43
  %v79 = vpop.f32.mrf.mxu0
  %v80 = vadd.f32 %v27, %v79
  %v81 = vpop.f32.mrf.mxu0
  %v82 = vpop.f32.mrf.mxu0
  %v83 = vadd.f32 %v27, %v82
  %v84 = vpop.f32.mrf.mxu0
  %85 = vdwg.mxu0
  %v86 = vpack.c.bf16 %v83, %v80
  %v88 = vunpack.c.l.b16 %v86
  %v89 = vunpack.c.h.b16 %v86
  %v90 = vpack.c.b16 %v88, %v88
  %v91 = vpack.c.b16 %v89, %v89
  %vm94 = vcmask 781312
  %95 = vst.msk [vmem:[%s3] sm:$0xf] %vm94, %v90
  %96 = vst.msk [vmem:[%s3 + $0x4] sm:$0xf] %vm94, %v91
  // Predicated region
  $region14: #{decoder_layer.8} parent=0 // pred_check
    _
  $region15: #{decoder_layer.8} parent=0 // pred_check_branch
    %98 = sbr.rel (0) target = $region17
  $region16: #{decoder_layer.8} parent=0 // pred_region
    _
  $region17: #{decoder_layer.8} parent=0 // pred_fallthru
    _
  // Predicated region
  $region18: #{decoder_layer.8} parent=0 // pred_check
    _
  $region19: #{decoder_layer.8} parent=0 // pred_check_branch
    %100 = sbr.rel (0) target = $region21
  $region20: #{decoder_layer.8} parent=0 // pred_region
    _
  $region21: #{decoder_layer.8} parent=0 // pred_fallthru
    _

// kernel: decoder_layer.10
$region0: #{decoder_layer.10}
  #allocation0 [shape = 'u32[]', space=smem, size = 0x4, offset = 0x4, fixed_abs, tag = 'smem constant byte address 0x4 - core index']
  #allocation1 [shape = 'u32[144,128]{1,0:T(1,128)}', space=vmem, size = 0x12000, scoped, tag = 'internal scratch']
  %s0 = inlined_call_operand.vmem [shape: bf16[16,32], index: 0, kind: input, shape index: {}]
  %s1 = inlined_call_operand.vmem [shape: bf16[32,32], index: 1, kind: input, shape index: {}]
  %s2 = inlined_call_operand.vmem [shape: f32[1,32], index: 2, kind: input, shape index: {}]
  %s3 = inlined_call_operand.vmem [shape: f32[16,32], index: 3, kind: input, shape index: {}]
  %s4 = inlined_call_operand.vmem [shape: f32[1,32], index: 4, kind: input, shape index: {}]
  %s5 = inlined_call_operand.vmem [shape: f32[1,32], index: 5, kind: input, shape index: {}]
  %s6 = inlined_call_operand.vmem [shape: f32[16,32], index: 6, kind: output, shape index: {}]
  %s7 = sld [smem:[#allocation0]]
  $region34: #{decoder_layer.10} parent=0
    _
  %s9 = ssub.s32 1, %s7
  %s10 = scalar_select 0, %s9, %s7
  // Predicated region
  $region2: #{decoder_layer.10} parent=0 // pred_check
    _
  $region3: #{decoder_layer.10} parent=0 // pred_check_branch
    %12 = sbr.rel (0) target = $region5
  $region4: #{decoder_layer.10} parent=0 // pred_region
    _
  $region5: #{decoder_layer.10} parent=0 // pred_fallthru
    _
  // Predicated region
  $region6: #{decoder_layer.10} parent=0 // pred_check
    _
  $region7: #{decoder_layer.10} parent=0 // pred_check_branch
    %14 = sbr.rel (0) target = $region9
  $region8: #{decoder_layer.10} parent=0 // pred_region
    _
  $region9: #{decoder_layer.10} parent=0 // pred_fallthru
    _
  // Predicated region
  $region10: #{decoder_layer.10} parent=0 // pred_check
    _
  $region11: #{decoder_layer.10} parent=0 // pred_check_branch
    %16 = sbr.rel (0) target = $region13
  $region12: #{decoder_layer.10} parent=0 // pred_region
    _
  $region13: #{decoder_layer.10} parent=0 // pred_fallthru
    _
  // Predicated region
  $region14: #{decoder_layer.10} parent=0 // pred_check
    _
  $region15: #{decoder_layer.10} parent=0 // pred_check_branch
    %18 = sbr.rel (0) target = $region17
  $region16: #{decoder_layer.10} parent=0 // pred_region
    _
  $region17: #{decoder_layer.10} parent=0 // pred_fallthru
    _
  // Predicated region
  $region18: #{decoder_layer.10} parent=0 // pred_check
    _
  $region19: #{decoder_layer.10} parent=0 // pred_check_branch
    %20 = sbr.rel (0) target = $region21
  $region20: #{decoder_layer.10} parent=0 // pred_region
    _
  $region21: #{decoder_layer.10} parent=0 // pred_fallthru
    _
  // Predicated region
  $region22: #{decoder_layer.10} parent=0 // pred_check
    _
  $region23: #{decoder_layer.10} parent=0 // pred_check_branch
    %22 = sbr.rel (0) target = $region25
  $region24: #{decoder_layer.10} parent=0 // pred_region
    _
  $region25: #{decoder_layer.10} parent=0 // pred_fallthru
    _
  %v24 = vld [vmem:[%s0] sm:$0xf]
  %v25 = vld [vmem:[%s0 + $0x4] sm:$0xf]
  %v26 = vld [vmem:[%s1] sm:$0xf]
  %v27 = vld [vmem:[%s1 + $0x4] sm:$0xf]
  %v28 = vld [vmem:[%s1 + $0x8] sm:$0xf]
  %v29 = vld [vmem:[%s1 + $0xc] sm:$0xf]
  %v30 = vld [vmem:[%s2] sm:$0x1]
  %v32 = vlaneseq
  %v33 = vshrl.u32 %v32, 7
  %v34 = vsub.s32 0, %v33
  %v35 = vrot.slane %v30, %v34
  %v39 = vunpack.c.l.b16 %v24
  %v40 = vunpack.c.l.b16 %v25
  %v41 = vpack.c.b16 %v40, %v39
  %v46 = vunpack.c.l.b16 %v26
  %v47 = vunpack.c.l.b16 %v27
  %v48 = vunpack.c.l.b16 %v28
  %v49 = vunpack.c.l.b16 %v29
  %v50 = vpack.c.b16 %v47, %v46
  %v51 = vpack.c.b16 %v49, %v48
  %vm54 = vcmask 261120
  %v56 = vsel %vm54, %v41, 0
  %58 = vmatprep.subr.bf16.mxu0 0
  %59 = vmatpush1.bf16.msra.mxu0 0
  %60 = vmatprep.subr.bf16.mxu0 0
  %61 = vmatpush1.bf16.msra.mxu0 0
  %62 = vmatprep.subr.bf16.mxu0 0
  %63 = vmatpush1.bf16.msra.mxu0 0
  %64 = vmatprep.subr.bf16.mxu0 0
  %65 = vmatpush1.bf16.msra.mxu0 0
  %66 = vmatprep.subr.bf16.mxu0 0
  %67 = vmatpush1.bf16.msra.mxu0 0
  %68 = vmatprep.subr.bf16.mxu0 0
  %69 = vmatpush1.bf16.msra.mxu0 0
  %70 = vmatprep.subr.bf16.mxu0 0
  %71 = vmatpush1.bf16.msra.mxu0 %v51
  %72 = vmatprep.subr.bf16.mxu0 0
  %73 = vmatpush1.bf16.msra.mxu0 %v50
  %74 = vmatprep.subr.bf16.mxu0 0
  %75 = vmatpush2.bf16.msra.mxu0 0
  %76 = vmatprep.subr.bf16.mxu0 0
  %77 = vmatpush2.bf16.msra.mxu0 0
  %78 = vmatprep.subr.bf16.mxu0 0
  %79 = vmatpush2.bf16.msra.mxu0 0
  %80 = vmatprep.subr.bf16.mxu0 0
  %81 = vmatpush2.bf16.msra.mxu0 0
  %82 = vmatprep.subr.bf16.mxu0 0
  %83 = vmatpush2.bf16.msra.mxu0 0
  %84 = vmatprep.subr.bf16.mxu0 0
  %85 = vmatpush2.bf16.msra.mxu0 0
  %86 = vmatprep.subr.bf16.mxu0 0
  %87 = vmatpush2.bf16.msra.mxu0 0
  %88 = vmatprep.subr.bf16.mxu0 0
  %89 = vmatpush2.bf16.msra.mxu0 0
  %90 = vmatprep.mubr.bf16.mxu0 0
  %91 = vmatmul.mubr.bf16.gmra.mxu0 %v56
  %v92 = vpop.f32.mrf.mxu0
  %v93 = vadd.f32 %v35, %v92
  %v94 = vpop.f32.mrf.mxu0
  %v95 = vpop.f32.mrf.mxu0
  %v96 = vadd.f32 %v35, %v95
  %v97 = vpop.f32.mrf.mxu0
  %98 = vdwg.mxu0
  %v99 = vld [vmem:[%s3] sm:$0xff]
  %v100 = vld [vmem:[%s3 + $0x8] sm:$0xff]
  %v101 = vadd.f32 %v93, %v99
  %v102 = vadd.f32 %v96, %v100
  %v103 = vsel %vm54, %v101, 0.0
  %104 = vadd.xlane.f32.xlu0 %v103
  %v105 = vpop.xlane.xlu0 %104
  %v106 = vsel %vm54, %v102, 0.0
  %107 = vadd.xlane.f32.xlu0 %v106
  %v108 = vpop.xlane.xlu0 %107
  %v109 = vrcp.pop 32.0
  %v110 = vmul.f32 %v105, %v109
  %v111 = vmul.f32 %v108, %v109
  %v112 = vsub.f32 %v101, %v110
  %v113 = vsub.f32 %v102, %v111
  %v114 = vmul.f32 %v112, %v112
  %v115 = vmul.f32 %v113, %v113
  %v116 = vsel %vm54, %v114, 0.0
  %117 = vadd.xlane.f32.xlu0 %v116
  %v118 = vpop.xlane.xlu0 %117
  %v119 = vsel %vm54, %v115, 0.0
  %120 = vadd.xlane.f32.xlu0 %v119
  %v121 = vpop.xlane.xlu0 %120
  %v122 = vmul.f32 %v118, %v109
  %v123 = vmul.f32 %v121, %v109
  %v124 = vadd.f32 %v122, 1e-06
  %v125 = vadd.f32 %v123, 1e-06
  %v126 = vrsqrt.pop %v124
  %v127 = vrsqrt.pop %v125
  %v128 = vmul.f32 %v112, %v126
  %v129 = vmul.f32 %v113, %v127
  %v130 = vld [vmem:[%s4] sm:$0x1]
  %v132 = vlaneseq
  %v133 = vshrl.u32 %v132, 7
  %v134 = vsub.s32 0, %v133
  %v135 = vrot.slane %v130, %v134
  %v137 = vmul.f32 %v128, %v135
  %v138 = vmul.f32 %v129, %v135
  %v139 = vld [vmem:[%s5] sm:$0x1]
  %v141 = vlaneseq
  %v142 = vshrl.u32 %v141, 7
  %v143 = vsub.s32 0, %v142
  %v144 = vrot.slane %v139, %v143
  %v146 = vadd.f32 %v137, %v144
  %v147 = vadd.f32 %v138, %v144
  %148 = vst.msk [vmem:[%s6] sm:$0xff] %vm54, %v146
  %149 = vst.msk [vmem:[%s6 + $0x8] sm:$0xff] %vm54, %v147
  // Predicated region
  $region26: #{decoder_layer.10} parent=0 // pred_check
    _
  $region27: #{decoder_layer.10} parent=0 // pred_check_branch
    %151 = sbr.rel (0) target = $region29
  $region28: #{decoder_layer.10} parent=0 // pred_region
    _
  $region29: #{decoder_layer.10} parent=0 // pred_fallthru
    _
  // Predicated region
  $region30: #{decoder_layer.10} parent=0 // pred_check
    _
  $region31: #{decoder_layer.10} parent=0 // pred_check_branch
    %153 = sbr.rel (0) target = $region33
  $region32: #{decoder_layer.10} parent=0 // pred_region
    _
  $region33: #{decoder_layer.10} parent=0 // pred_fallthru
    _

// kernel: decoder_layer.11
$region0: #{decoder_layer.11}
  #allocation0 [shape = 'u32[]', space=smem, size = 0x4, offset = 0x4, fixed_abs, tag = 'smem constant byte address 0x4 - core index']
  #allocation1 [shape = 'u32[144,128]{1,0:T(1,128)}', space=vmem, size = 0x12000, scoped, tag = 'internal scratch']
  %s0 = inlined_call_operand.vmem [shape: f32[16,32], index: 0, kind: input, shape index: {}]
  %s1 = inlined_call_operand.vmem [shape: bf16[32,32], index: 1, kind: input, shape index: {}]
  %s2 = inlined_call_operand.vmem [shape: f32[1,32], index: 2, kind: input, shape index: {}]
  %s3 = inlined_call_operand.vmem [shape: bf16[16,32], index: 3, kind: output, shape index: {}]
  %s4 = sld [smem:[#allocation0]]
  $region22: #{decoder_layer.11} parent=0
    _
  %s6 = ssub.s32 1, %s4
  %s7 = scalar_select 0, %s6, %s4
  // Predicated region
  $region2: #{decoder_layer.11} parent=0 // pred_check
    _
  $region3: #{decoder_layer.11} parent=0 // pred_check_branch
    %9 = sbr.rel (0) target = $region5
  $region4: #{decoder_layer.11} parent=0 // pred_region
    _
  $region5: #{decoder_layer.11} parent=0 // pred_fallthru
    _
  // Predicated region
  $region6: #{decoder_layer.11} parent=0 // pred_check
    _
  $region7: #{decoder_layer.11} parent=0 // pred_check_branch
    %11 = sbr.rel (0) target = $region9
  $region8: #{decoder_layer.11} parent=0 // pred_region
    _
  $region9: #{decoder_layer.11} parent=0 // pred_fallthru
    _
  // Predicated region
  $region10: #{decoder_layer.11} parent=0 // pred_check
    _
  $region11: #{decoder_layer.11} parent=0 // pred_check_branch
    %13 = sbr.rel (0) target = $region13
  $region12: #{decoder_layer.11} parent=0 // pred_region
    _
  $region13: #{decoder_layer.11} parent=0 // pred_fallthru
    _
  %v15 = vld [vmem:[%s0] sm:$0xff]
  %v16 = vld [vmem:[%s0 + $0x8] sm:$0xff]
  %v17 = vpack.c.bf16 %v16, %v15
  %v18 = vld [vmem:[%s1] sm:$0xf]
  %v19 = vld [vmem:[%s1 + $0x4] sm:$0xf]
  %v20 = vld [vmem:[%s1 + $0x8] sm:$0xf]
  %v21 = vld [vmem:[%s1 + $0xc] sm:$0xf]
  %v22 = vld [vmem:[%s2] sm:$0x1]
  %v24 = vlaneseq
  %v25 = vshrl.u32 %v24, 7
  %v26 = vsub.s32 0, %v25
  %v27 = vrot.slane %v22, %v26
  %v33 = vunpack.c.l.b16 %v18
  %v34 = vunpack.c.l.b16 %v19
  %v35 = vunpack.c.l.b16 %v20
  %v36 = vunpack.c.l.b16 %v21
  %v37 = vpack.c.b16 %v34, %v33
  %v38 = vpack.c.b16 %v36, %v35
  %vm41 = vcmask 261120
  %v43 = vsel %vm41, %v17, 0
  %45 = vmatprep.subr.bf16.mxu0 0
  %46 = vmatpush1.bf16.msra.mxu0 0
  %47 = vmatprep.subr.bf16.mxu0 0
  %48 = vmatpush1.bf16.msra.mxu0 0
  %49 = vmatprep.subr.bf16.mxu0 0
  %50 = vmatpush1.bf16.msra.mxu0 0
  %51 = vmatprep.subr.bf16.mxu0 0
  %52 = vmatpush1.bf16.msra.mxu0 0
  %53 = vmatprep.subr.bf16.mxu0 0
  %54 = vmatpush1.bf16.msra.mxu0 0
  %55 = vmatprep.subr.bf16.mxu0 0
  %56 = vmatpush1.bf16.msra.mxu0 0
  %57 = vmatprep.subr.bf16.mxu0 0
  %58 = vmatpush1.bf16.msra.mxu0 %v38
  %59 = vmatprep.subr.bf16.mxu0 0
  %60 = vmatpush1.bf16.msra.mxu0 %v37
  %61 = vmatprep.subr.bf16.mxu0 0
  %62 = vmatpush2.bf16.msra.mxu0 0
  %63 = vmatprep.subr.bf16.mxu0 0
  %64 = vmatpush2.bf16.msra.mxu0 0
  %65 = vmatprep.subr.bf16.mxu0 0
  %66 = vmatpush2.bf16.msra.mxu0 0
  %67 = vmatprep.subr.bf16.mxu0 0
  %68 = vmatpush2.bf16.msra.mxu0 0
  %69 = vmatprep.subr.bf16.mxu0 0
  %70 = vmatpush2.bf16.msra.mxu0 0
  %71 = vmatprep.subr.bf16.mxu0 0
  %72 = vmatpush2.bf16.msra.mxu0 0
  %73 = vmatprep.subr.bf16.mxu0 0
  %74 = vmatpush2.bf16.msra.mxu0 0
  %75 = vmatprep.subr.bf16.mxu0 0
  %76 = vmatpush2.bf16.msra.mxu0 0
  %77 = vmatprep.mubr.bf16.mxu0 0
  %78 = vmatmul.mubr.bf16.gmra.mxu0 %v43
  %v79 = vpop.f32.mrf.mxu0
  %v80 = vadd.f32 %v27, %v79
  %v81 = vpop.f32.mrf.mxu0
  %v82 = vpop.f32.mrf.mxu0
  %v83 = vadd.f32 %v27, %v82
  %v84 = vpop.f32.mrf.mxu0
  %85 = vdwg.mxu0
  %v86 = vpack.c.bf16 %v83, %v80
  %v88 = vunpack.c.l.b16 %v86
  %v89 = vunpack.c.h.b16 %v86
  %v90 = vpack.c.b16 %v88, %v88
  %v91 = vpack.c.b16 %v89, %v89
  %vm94 = vcmask 257024
  %95 = vst.msk [vmem:[%s3] sm:$0xf] %vm94, %v90
  %96 = vst.msk [vmem:[%s3 + $0x4] sm:$0xf] %vm94, %v91
  // Predicated region
  $region14: #{decoder_layer.11} parent=0 // pred_check
    _
  $region15: #{decoder_layer.11} parent=0 // pred_check_branch
    %98 = sbr.rel (0) target = $region17
  $region16: #{decoder_layer.11} parent=0 // pred_region
    _
  $region17: #{decoder_layer.11} parent=0 // pred_fallthru
    _
  // Predicated region
  $region18: #{decoder_layer.11} parent=0 // pred_check
    _
  $region19: #{decoder_layer.11} parent=0 // pred_check_branch
    %100 = sbr.rel (0) target = $region21
  $region20: #{decoder_layer.11} parent=0 // pred_region
    _
  $region21: #{decoder_layer.11} parent=0 // pred_fallthru
    _

// kernel: decoder_layer.9
$region0: #{decoder_layer.9}
  #allocation0 [shape = 'u32[]', space=smem, size = 0x4, offset = 0x4, fixed_abs, tag = 'smem constant byte address 0x4 - core index']
  #allocation1 [shape = 'u32[144,128]{1,0:T(1,128)}', space=vmem, size = 0x12000, scoped, tag = 'internal scratch']
  %s0 = inlined_call_operand.vmem [shape: bf16[2,4,8,8], index: 0, kind: input, shape index: {}]
  %s1 = inlined_call_operand.vmem [shape: bf16[2,4,8,8], index: 1, kind: input, shape index: {}]
  %s2 = inlined_call_operand.vmem [shape: bf16[2,4,8,8], index: 2, kind: input, shape index: {}]
  %s3 = inlined_call_operand.hbm [shape: bf16[2,4,8,8], index: 3, kind: output, shape index: {0}]
  %s4 = inlined_call_operand.vmem [shape: bf16[2,4,8,8], index: 4, kind: output, shape index: {1}]
  %5 = xla_tuple %s3, %s4
  %s6 = sld [smem:[#allocation0]]
  $region53: #{decoder_layer.9} parent=0
    _
  %s8 = ssub.s32 1, %s6
  %s9 = scalar_select 0, %s8, %s6
  $region1: #{decoder_layer.9} parent=0
    #allocation2 [shape = 'u8[16384]{0}', space=vmem, size = 0x4000, scoped, tag = 'output window, operand 0']
    #allocation3 [shape = 's32[2]{0}', space=sflag, size = 0x8, scoped, tag = 'scoped memory for decoder_layer.9']
    %10 = vsyncpa [#allocation3], 0
    %s11 = scalar_lea.sflag [#allocation3], 1
    %12 = vsyncpa %s11, 0
    loop: start=0, step=1, limit=4
    $region2: #{decoder_layer.9} parent=1 // loop_pre_header
      _
    $region3: #{decoder_layer.9} parent=1 // loop_header
      %s14 = sphi 0, %s18
      %p15 = scmp.ge.s32.totalorder %s14, 4
      %s21 = sphi 0, %s33
      %s22 = sphi 0, %s29
      %s23 = sphi 0, %s21
      %s24 = sphi 0, %s22
      %s25 = sphi 0, %s23
      %s26 = sphi 0, %s24
      %s38 = sphi 0, %s40
      %s41 = sphi 0, %s38
      %s42 = sphi 0, %s41
      %s58 = sphi 0, %s42
      %s64 = sphi 0, %s66
      %s67 = sphi 0, %s64
      %s68 = sphi 0, %s67
      %s84 = sphi 0, %s68
      %s90 = sphi 0, %s92
      %s93 = sphi 0, %s90
      %s94 = sphi 0, %s93
      %s110 = sphi 0, %s94
      %s118 = sphi 0, %s120
      %s121 = sphi 0, %s118
      %s122 = sphi 0, %s121
      %s138 = sphi 0, %s122
      %s146 = sphi 0, %s148
      %s149 = sphi 0, %s146
      %s150 = sphi 0, %s149
      %s166 = sphi 0, %s150
    $region4: #{decoder_layer.9} parent=1 // loop_header_branch
      %17 = sbr.rel (%p15) target = $region8
    $region5: #{decoder_layer.9} parent=1 // loop_body
      %s19 = ssub.s32 %s14, 1
      %s20 = ssub.s32 %s14, 2
      %s27 = sadd.s32 1, %s22
      %p28 = scmp.ge.s32.totalorder %s27, 1
      %s29 = scalar_select %p28, 0, %s27
      %s30 = sadd.s32 1, %s21
      %s31 = scalar_select %p28, %s30, %s21
      %p32 = scmp.ge.s32.totalorder %s31, 2
      %s33 = scalar_select %p32, 0, %s31
      %s34 = ssub.s32 %s21, %s33
      %s35 = ssub.s32 %s22, %s29
      %s36 = sor.u32 %s34, %s35
      %p37 = scmp.eq.s32.totalorder %s36, 0
      %s39 = sadd.s32 %s38, 1
      %s40 = scalar_select %p37, %s38, %s39
      %p43 = pneg %p37
      %p44 = scmp.eq.s32.totalorder %s14, 1
      %p45 = por %p43, %p44
      %p46 = scmp.ne.s32.totalorder %s38, %s41
      %p47 = scmp.eq.s32.totalorder %s14, 0
      %p48 = por %p46, %p47
      %p49 = scmp.ne.s32.totalorder %s38, %s41
      %p50 = scmp.eq.s32.totalorder %s19, 1
      %p51 = por %p49, %p50
      %p52 = scmp.ne.s32.totalorder %s41, %s42
      %p53 = scmp.eq.s32.totalorder %s19, 0
      %p54 = por %p52, %p53
      %p55 = scmp.ne.s32.totalorder %s41, %s42
      %p56 = scmp.eq.s32.totalorder %s20, 1
      %p57 = por %p55, %p56
      %p59 = scmp.ne.s32.totalorder %s42, %s58
      %p60 = scmp.eq.s32.totalorder %s20, 0
      %p61 = por %p59, %p60
      %s62 = ssub.s32 %s21, %s33
      %p63 = scmp.eq.s32.totalorder %s62, 0
      %s65 = sadd.s32 %s64, 1
      %s66 = scalar_select %p63, %s64, %s65
      %p69 = pneg %p63
      %p70 = scmp.eq.s32.totalorder %s14, 1
      %p71 = por %p69, %p70
      %p72 = scmp.ne.s32.totalorder %s64, %s67
      %p73 = scmp.eq.s32.totalorder %s14, 0
      %p74 = por %p72, %p73
      %p75 = scmp.ne.s32.totalorder %s64, %s67
      %p76 = scmp.eq.s32.totalorder %s19, 1
      %p77 = por %p75, %p76
      %p78 = scmp.ne.s32.totalorder %s67, %s68
      %p79 = scmp.eq.s32.totalorder %s19, 0
      %p80 = por %p78, %p79
      %p81 = scmp.ne.s32.totalorder %s67, %s68
      %p82 = scmp.eq.s32.totalorder %s20, 1
      %p83 = por %p81, %p82
      %p85 = scmp.ne.s32.totalorder %s68, %s84
      %p86 = scmp.eq.s32.totalorder %s20, 0
      %p87 = por %p85, %p86
      %s88 = ssub.s32 %s21, %s33
      %p89 = scmp.eq.s32.totalorder %s88, 0
      %s91 = sadd.s32 %s90, 1
      %s92 = scalar_select %p89, %s90, %s91
      %p95 = pneg %p89
      %p96 = scmp.eq.s32.totalorder %s14, 1
      %p97 = por %p95, %p96
      %p98 = scmp.ne.s32.totalorder %s90, %s93
      %p99 = scmp.eq.s32.totalorder %s14, 0
      %p100 = por %p98, %p99
      %p101 = scmp.ne.s32.totalorder %s90, %s93
      %p102 = scmp.eq.s32.totalorder %s19, 1
      %p103 = por %p101, %p102
      %p104 = scmp.ne.s32.totalorder %s93, %s94
      %p105 = scmp.eq.s32.totalorder %s19, 0
      %p106 = por %p104, %p105
      %p107 = scmp.ne.s32.totalorder %s93, %s94
      %p108 = scmp.eq.s32.totalorder %s20, 1
      %p109 = por %p107, %p108
      %p111 = scmp.ne.s32.totalorder %s94, %s110
      %p112 = scmp.eq.s32.totalorder %s20, 0
      %p113 = por %p111, %p112
      %s114 = ssub.s32 %s21, %s33
      %s115 = ssub.s32 %s22, %s29
      %s116 = sor.u32 %s114, %s115
      %p117 = scmp.eq.s32.totalorder %s116, 0
      %s119 = sadd.s32 %s118, 1
      %s120 = scalar_select %p117, %s118, %s119
      %p123 = pneg %p117
      %p124 = scmp.eq.s32.totalorder %s14, 1
      %p125 = por %p123, %p124
      %p126 = scmp.ne.s32.totalorder %s118, %s121
      %p127 = scmp.eq.s32.totalorder %s14, 0
      %p128 = por %p126, %p127
      %p129 = scmp.ne.s32.totalorder %s118, %s121
      %p130 = scmp.eq.s32.totalorder %s19, 1
      %p131 = por %p129, %p130
      %p132 = scmp.ne.s32.totalorder %s121, %s122
      %p133 = scmp.eq.s32.totalorder %s19, 0
      %p134 = por %p132, %p133
      %p135 = scmp.ne.s32.totalorder %s121, %s122
      %p136 = scmp.eq.s32.totalorder %s20, 1
      %p137 = por %p135, %p136
      %p139 = scmp.ne.s32.totalorder %s122, %s138
      %p140 = scmp.eq.s32.totalorder %s20, 0
      %p141 = por %p139, %p140
      %s142 = ssub.s32 %s21, %s33
      %s143 = ssub.s32 %s22, %s29
      %s144 = sor.u32 %s142, %s143
      %p145 = scmp.eq.s32.totalorder %s144, 0
      %s147 = sadd.s32 %s146, 1
      %s148 = scalar_select %p145, %s146, %s147
      %p151 = pneg %p145
      %p152 = scmp.eq.s32.totalorder %s14, 1
      %p153 = por %p151, %p152
      %p154 = scmp.ne.s32.totalorder %s146, %s149
      %p155 = scmp.eq.s32.totalorder %s14, 0
      %p156 = por %p154, %p155
      %p157 = scmp.ne.s32.totalorder %s146, %s149
      %p158 = scmp.eq.s32.totalorder %s19, 1
      %p159 = por %p157, %p158
      %p160 = scmp.ne.s32.totalorder %s149, %s150
      %p161 = scmp.eq.s32.totalorder %s19, 0
      %p162 = por %p160, %p161
      %p163 = scmp.ne.s32.totalorder %s149, %s150
      %p164 = scmp.eq.s32.totalorder %s20, 1
      %p165 = por %p163, %p164
      %p167 = scmp.ne.s32.totalorder %s150, %s166
      %p168 = scmp.eq.s32.totalorder %s20, 0
      %p169 = por %p167, %p168
      %p170 = scmp.le.s32.totalorder 1, %s14
      %p171 = scmp.lt.s32.totalorder %s14, 3
      %p172 = pnand %p170, %p171
      %p173 = pneg %p172
      // Predicated region
      $region9: #{decoder_layer.9} parent=5 // pred_check
        _
      $region10: #{decoder_layer.9} parent=5 // pred_check_branch
        %175 = sbr.rel (%p172) target = $region12
      $region11: #{decoder_layer.9} parent=5 // pred_region
        %s176 = ssub.s32 %s14, 1
      $region12: #{decoder_layer.9} parent=5 // pred_fallthru
        _
      %p177 = scmp.lt.s32.totalorder %s14, 2
      // Predicated region
      $region13: #{decoder_layer.9} parent=5 // pred_check
        %p178 = pneg %p177
      $region14: #{decoder_layer.9} parent=5 // pred_check_branch
        %180 = sbr.rel (%p178) target = $region16
      $region15: #{decoder_layer.9} parent=5 // pred_region
        // Predicated region
        $region17: #{decoder_layer.9} parent=15 // pred_check
          %p181 = pneg %p48
        $region18: #{decoder_layer.9} parent=15 // pred_check_branch
          %183 = sbr.rel (%p181) target = $region20
        $region19: #{decoder_layer.9} parent=15 // pred_region
          %p184 = scmp.lt.s32.totalorder %s21, 1
          %s185 = scalar_select %p184, %s21, 1
          %p186 = scmp.lt.s32.totalorder %s22, 0
          %s187 = scalar_select %p186, %s22, 0
          %s188 = smul.addr %s185, 4
          %s189 = sadd.s32 %s187, %s188
          %s190 = smul.addr %s189, 4
          %s191 = scalar_lea.vmem %s0, %s190
        $region20: #{decoder_layer.9} parent=15 // pred_fallthru
          _
        // Predicated region
        $region21: #{decoder_layer.9} parent=15 // pred_check
          %p192 = pneg %p74
        $region22: #{decoder_layer.9} parent=15 // pred_check_branch
          %194 = sbr.rel (%p192) target = $region24
        $region23: #{decoder_layer.9} parent=15 // pred_region
          %p195 = scmp.lt.s32.totalorder %s21, 1
          %s196 = scalar_select %p195, %s21, 1
          %s197 = smul.addr %s196, 4
          %s198 = smul.addr %s197, 4
          %s199 = scalar_lea.vmem %s1, %s198
        $region24: #{decoder_layer.9} parent=15 // pred_fallthru
          _
        // Predicated region
        $region25: #{decoder_layer.9} parent=15 // pred_check
          %p200 = pneg %p100
        $region26: #{decoder_layer.9} parent=15 // pred_check_branch
          %202 = sbr.rel (%p200) target = $region28
        $region27: #{decoder_layer.9} parent=15 // pred_region
          %p203 = scmp.lt.s32.totalorder %s21, 1
          %s204 = scalar_select %p203, %s21, 1
          %s205 = smul.addr %s204, 4
          %s206 = smul.addr %s205, 4
          %s207 = scalar_lea.vmem %s2, %s206
        $region28: #{decoder_layer.9} parent=15 // pred_fallthru
          _
      $region16: #{decoder_layer.9} parent=5 // pred_fallthru
        _
      %p208 = scmp.le.s32.totalorder 1, %s14
      %p209 = scmp.lt.s32.totalorder %s14, 3
      %p210 = pnand %p208, %p209
      %p211 = pneg %p210
      // Predicated region
      $region29: #{decoder_layer.9} parent=5 // pred_check
        _
      $region30: #{decoder_layer.9} parent=5 // pred_check_branch
        %213 = sbr.rel (%p210) target = $region32
      $region31: #{decoder_layer.9} parent=5 // pred_region
        %s214 = ssub.s32 %s14, 1
        %p215 = scmp.lt.s32.totalorder %s23, 1
        %s216 = scalar_select %p215, %s23, 1
        %p217 = scmp.lt.s32.totalorder %s24, 0
        %s218 = scalar_select %p217, %s24, 0
        %s219 = smul.addr %s216, 4
        %s220 = sadd.s32 %s218, %s219
        %s221 = smul.addr %s220, 4
        %s222 = scalar_lea.vmem %s0, %s221
        %p223 = pneg %p54
        %p224 = pneg %p51
        %p225 = scmp.lt.s32.totalorder %s23, 1
        %s226 = scalar_select %p225, %s23, 1
        %s227 = smul.addr %s226, 4
        %s228 = smul.addr %s227, 4
        %s229 = scalar_lea.vmem %s1, %s228
        %p230 = pneg %p80
        %p231 = pneg %p77
        %p232 = scmp.lt.s32.totalorder %s23, 1
        %s233 = scalar_select %p232, %s23, 1
        %s234 = smul.addr %s233, 4
        %s235 = smul.addr %s234, 4
        %s236 = scalar_lea.vmem %s2, %s235
        %p237 = pneg %p106
        %p238 = pneg %p103
        %p239 = pneg %p134
        %p240 = pneg %p131
        %s241 = sand.u32 %s121, 1
        %s242 = scalar_lea.sflag [#allocation3], %s241
        %s243 = sand.u32 %s121, 1
        %s244 = smul.addr %s243, 16
        %s245 = scalar_lea.vmem [#allocation2], %s244
        %p246 = pneg %p162
        %p247 = pneg %p159
        %p248 = scmp.lt.s32.totalorder %s23, 1
        %s249 = scalar_select %p248, %s23, 1
        %p250 = scmp.lt.s32.totalorder %s24, 0
        %s251 = scalar_select %p250, %s24, 0
        %s252 = smul.addr %s249, 4
        %s253 = sadd.s32 %s251, %s252
        %s254 = smul.addr %s253, 4
        %s255 = scalar_lea.vmem %s4, %s254
        %p256 = scmp.lt.s32.totalorder %s23, 1
        %s257 = scalar_select %p256, %s23, 1
        %p258 = scmp.lt.s32.totalorder %s24, 0
        %s259 = scalar_select %p258, %s24, 0
        %s260 = smul.addr %s257, 4
        %s261 = sadd.s32 %s259, %s260
        %s262 = smul.addr %s261, 4
        %s263 = scalar_lea.vmem %s0, %s262
        %p264 = scmp.lt.s32.totalorder %s23, 1
        %s265 = scalar_select %p264, %s23, 1
        %s266 = smul.addr %s265, 4
        %s267 = smul.addr %s266, 4
        %s268 = scalar_lea.vmem %s1, %s267
        %p269 = scmp.lt.s32.totalorder %s23, 1
        %s270 = scalar_select %p269, %s23, 1
        %s271 = smul.addr %s270, 4
        %s272 = smul.addr %s271, 4
        %s273 = scalar_lea.vmem %s2, %s272
        %p274 = scmp.lt.s32.totalorder %s23, 1
        %s275 = scalar_select %p274, %s23, 1
        %p276 = scmp.lt.s32.totalorder %s24, 0
        %s277 = scalar_select %p276, %s24, 0
        %s278 = smul.addr %s275, 4
        %s279 = sadd.s32 %s277, %s278
        %s280 = smul.addr %s279, 4
        %s281 = scalar_lea.vmem %s4, %s280
        %v283 = vld [vmem:[%s263] sm:$0xf]
        %v284 = vld [vmem:[%s263 + $0x4] sm:$0xf]
        %v285 = vld [vmem:[%s263 + $0x8] sm:$0xf]
        %v286 = vld [vmem:[%s263 + $0xc] sm:$0xf]
        %v287 = vld [vmem:[%s268] sm:$0xf]
        %v288 = vld [vmem:[%s268 + $0x4] sm:$0xf]
        %v289 = vld [vmem:[%s268 + $0x8] sm:$0xf]
        %v290 = vld [vmem:[%s268 + $0xc] sm:$0xf]
        %v291 = vld [vmem:[%s273] sm:$0xf]
        %v292 = vld [vmem:[%s273 + $0x4] sm:$0xf]
        %v293 = vld [vmem:[%s273 + $0x8] sm:$0xf]
        %v294 = vld [vmem:[%s273 + $0xc] sm:$0xf]
        %vm295 = vcmask 64512
        %v297 = vsel %vm295, %v283, 0
        %v300 = vsel %vm295, %v287, 0
        %302 = vmatprep.subr.bf16.mxu0 0
        %303 = vmatpush1.bf16.xpose.msra.mxu0 0
        %304 = vmatprep.subr.bf16.mxu0 0
        %305 = vmatpush1.bf16.xpose.msra.mxu0 0
        %306 = vmatprep.subr.bf16.mxu0 0
        %307 = vmatpush1.bf16.xpose.msra.mxu0 0
        %308 = vmatprep.subr.bf16.mxu0 0
        %309 = vmatpush1.bf16.xpose.msra.mxu0 0
        %310 = vmatprep.subr.bf16.mxu0 0
        %311 = vmatpush1.bf16.xpose.msra.mxu0 0
        %312 = vmatprep.subr.bf16.mxu0 0
        %313 = vmatpush1.bf16.xpose.msra.mxu0 0
        %314 = vmatprep.subr.bf16.mxu0 0
        %315 = vmatpush1.bf16.xpose.msra.mxu0 0
        %316 = vmatprep.subr.bf16.mxu0 0
        %317 = vmatpush1.bf16.xpose.msra.mxu0 %v300
        %318 = vmatprep.subr.bf16.mxu0 0
        %319 = vmatpush2.bf16.xpose.msra.mxu0 0
        %320 = vmatprep.subr.bf16.mxu0 0
        %321 = vmatpush2.bf16.xpose.msra.mxu0 0
        %322 = vmatprep.subr.bf16.mxu0 0
        %323 = vmatpush2.bf16.xpose.msra.mxu0 0
        %324 = vmatprep.subr.bf16.mxu0 0
        %325 = vmatpush2.bf16.xpose.msra.mxu0 0
        %326 = vmatprep.subr.bf16.mxu0 0
        %327 = vmatpush2.bf16.xpose.msra.mxu0 0
        %328 = vmatprep.subr.bf16.mxu0 0
        %329 = vmatpush2.bf16.xpose.msra.mxu0 0
        %330 = vmatprep.subr.bf16.mxu0 0
        %331 = vmatpush2.bf16.xpose.msra.mxu0 0
        %332 = vmatprep.subr.bf16.mxu0 0
        %333 = vmatpush2.bf16.xpose.msra.mxu0 0
        %334 = vmatprep.mubr.bf16.mxu0 0
        %335 = vmatmul.mubr.bf16.gmra.mxu0 %v297
        %v336 = vpop.f32.mrf.mxu0
        %v337 = vadd.f32 0.0, %v336
        %v338 = vpop.f32.mrf.mxu0
        %v339 = vpop.f32.mrf.mxu0
        %v340 = vpop.f32.mrf.mxu0
        %341 = vdwg.mxu0
        %v343 = vsel %vm295, %v284, 0
        %v346 = vsel %vm295, %v288, 0
        %348 = vmatprep.subr.bf16.mxu0 0
        %349 = vmatpush1.bf16.xpose.msra.mxu0 0
        %350 = vmatprep.subr.bf16.mxu0 0
        %351 = vmatpush1.bf16.xpose.msra.mxu0 0
        %352 = vmatprep.subr.bf16.mxu0 0
        %353 = vmatpush1.bf16.xpose.msra.mxu0 0
        %354 = vmatprep.subr.bf16.mxu0 0
        %355 = vmatpush1.bf16.xpose.msra.mxu0 0
        %356 = vmatprep.subr.bf16.mxu0 0
        %357 = vmatpush1.bf16.xpose.msra.mxu0 0
        %358 = vmatprep.subr.bf16.mxu0 0
        %359 = vmatpush1.bf16.xpose.msra.mxu0 0
        %360 = vmatprep.subr.bf16.mxu0 0
        %361 = vmatpush1.bf16.xpose.msra.mxu0 0
        %362 = vmatprep.subr.bf16.mxu0 0
        %363 = vmatpush1.bf16.xpose.msra.mxu0 %v346
        %364 = vmatprep.subr.bf16.mxu0 0
        %365 = vmatpush2.bf16.xpose.msra.mxu0 0
        %366 = vmatprep.subr.bf16.mxu0 0
        %367 = vmatpush2.bf16.xpose.msra.mxu0 0
        %368 = vmatprep.subr.bf16.mxu0 0
        %369 = vmatpush2.bf16.xpose.msra.mxu0 0
        %370 = vmatprep.subr.bf16.mxu0 0
        %371 = vmatpush2.bf16.xpose.msra.mxu0 0
        %372 = vmatprep.subr.bf16.mxu0 0
        %373 = vmatpush2.bf16.xpose.msra.mxu0 0
        %374 = vmatprep.subr.bf16.mxu0 0
        %375 = vmatpush2.bf16.xpose.msra.mxu0 0
        %376 = vmatprep.subr.bf16.mxu0 0
        %377 = vmatpush2.bf16.xpose.msra.mxu0 0
        %378 = vmatprep.subr.bf16.mxu0 0
        %379 = vmatpush2.bf16.xpose.msra.mxu0 0
        %380 = vmatprep.mubr.bf16.mxu0 0
        %381 = vmatmul.mubr.bf16.gmra.mxu0 %v343
        %v382 = vpop.f32.mrf.mxu0
        %v383 = vadd.f32 0.0, %v382
        %v384 = vpop.f32.mrf.mxu0
        %v385 = vpop.f32.mrf.mxu0
        %v386 = vpop.f32.mrf.mxu0
        %387 = vdwg.mxu0
        %v389 = vsel %vm295, %v285, 0
        %v392 = vsel %vm295, %v289, 0
        %394 = vmatprep.subr.bf16.mxu0 0
        %395 = vmatpush1.bf16.xpose.msra.mxu0 0
        %396 = vmatprep.subr.bf16.mxu0 0
        %397 = vmatpush1.bf16.xpose.msra.mxu0 0
        %398 = vmatprep.subr.bf16.mxu0 0
        %399 = vmatpush1.bf16.xpose.msra.mxu0 0
        %400 = vmatprep.subr.bf16.mxu0 0
        %401 = vmatpush1.bf16.xpose.msra.mxu0 0
        %402 = vmatprep.subr.bf16.mxu0 0
        %403 = vmatpush1.bf16.xpose.msra.mxu0 0
        %404 = vmatprep.subr.bf16.mxu0 0
        %405 = vmatpush1.bf16.xpose.msra.mxu0 0
        %406 = vmatprep.subr.bf16.mxu0 0
        %407 = vmatpush1.bf16.xpose.msra.mxu0 0
        %408 = vmatprep.subr.bf16.mxu0 0
        %409 = vmatpush1.bf16.xpose.msra.mxu0 %v392
        %410 = vmatprep.subr.bf16.mxu0 0
        %411 = vmatpush2.bf16.xpose.msra.mxu0 0
        %412 = vmatprep.subr.bf16.mxu0 0
        %413 = vmatpush2.bf16.xpose.msra.mxu0 0
        %414 = vmatprep.subr.bf16.mxu0 0
        %415 = vmatpush2.bf16.xpose.msra.mxu0 0
        %416 = vmatprep.subr.bf16.mxu0 0
        %417 = vmatpush2.bf16.xpose.msra.mxu0 0
        %418 = vmatprep.subr.bf16.mxu0 0
        %419 = vmatpush2.bf16.xpose.msra.mxu0 0
        %420 = vmatprep.subr.bf16.mxu0 0
        %421 = vmatpush2.bf16.xpose.msra.mxu0 0
        %422 = vmatprep.subr.bf16.mxu0 0
        %423 = vmatpush2.bf16.xpose.msra.mxu0 0
        %424 = vmatprep.subr.bf16.mxu0 0
        %425 = vmatpush2.bf16.xpose.msra.mxu0 0
        %426 = vmatprep.mubr.bf16.mxu0 0
        %427 = vmatmul.mubr.bf16.gmra.mxu0 %v389
        %v428 = vpop.f32.mrf.mxu0
        %v429 = vadd.f32 0.0, %v428
        %v430 = vpop.f32.mrf.mxu0
        %v431 = vpop.f32.mrf.mxu0
        %v432 = vpop.f32.mrf.mxu0
        %433 = vdwg.mxu0
        %v435 = vsel %vm295, %v286, 0
        %v438 = vsel %vm295, %v290, 0
        %440 = vmatprep.subr.bf16.mxu0 0
        %441 = vmatpush1.bf16.xpose.msra.mxu0 0
        %442 = vmatprep.subr.bf16.mxu0 0
        %443 = vmatpush1.bf16.xpose.msra.mxu0 0
        %444 = vmatprep.subr.bf16.mxu0 0
        %445 = vmatpush1.bf16.xpose.msra.mxu0 0
        %446 = vmatprep.subr.bf16.mxu0 0
        %447 = vmatpush1.bf16.xpose.msra.mxu0 0
        %448 = vmatprep.subr.bf16.mxu0 0
        %449 = vmatpush1.bf16.xpose.msra.mxu0 0
        %450 = vmatprep.subr.bf16.mxu0 0
        %451 = vmatpush1.bf16.xpose.msra.mxu0 0
        %452 = vmatprep.subr.bf16.mxu0 0
        %453 = vmatpush1.bf16.xpose.msra.mxu0 0
        %454 = vmatprep.subr.bf16.mxu0 0
        %455 = vmatpush1.bf16.xpose.msra.mxu0 %v438
        %456 = vmatprep.subr.bf16.mxu0 0
        %457 = vmatpush2.bf16.xpose.msra.mxu0 0
        %458 = vmatprep.subr.bf16.mxu0 0
        %459 = vmatpush2.bf16.xpose.msra.mxu0 0
        %460 = vmatprep.subr.bf16.mxu0 0
        %461 = vmatpush2.bf16.xpose.msra.mxu0 0
        %462 = vmatprep.subr.bf16.mxu0 0
        %463 = vmatpush2.bf16.xpose.msra.mxu0 0
        %464 = vmatprep.subr.bf16.mxu0 0
        %465 = vmatpush2.bf16.xpose.msra.mxu0 0
        %466 = vmatprep.subr.bf16.mxu0 0
        %467 = vmatpush2.bf16.xpose.msra.mxu0 0
        %468 = vmatprep.subr.bf16.mxu0 0
        %469 = vmatpush2.bf16.xpose.msra.mxu0 0
        %470 = vmatprep.subr.bf16.mxu0 0
        %471 = vmatpush2.bf16.xpose.msra.mxu0 0
        %472 = vmatprep.mubr.bf16.mxu0 0
        %473 = vmatmul.mubr.bf16.gmra.mxu0 %v435
        %v474 = vpop.f32.mrf.mxu0
        %v475 = vadd.f32 0.0, %v474
        %v476 = vpop.f32.mrf.mxu0
        %v477 = vpop.f32.mrf.mxu0
        %v478 = vpop.f32.mrf.mxu0
        %479 = vdwg.mxu0
        %v480 = vsel %vm295, %v337, -inf
        %481 = vmax.xlane.f32.xlu0 %v480
        %v482 = vpop.xlane.xlu0 %481
        %v483 = vsel %vm295, %v383, -inf
        %484 = vmax.xlane.f32.xlu0 %v483
        %v485 = vpop.xlane.xlu0 %484
        %v486 = vsel %vm295, %v429, -inf
        %487 = vmax.xlane.f32.xlu0 %v486
        %v488 = vpop.xlane.xlu0 %487
        %v489 = vsel %vm295, %v475, -inf
        %490 = vmax.xlane.f32.xlu0 %v489
        %v491 = vpop.xlane.xlu0 %490
        %v492 = vsub.f32 %v337, %v482
        %v493 = vsub.f32 %v383, %v485
        %v494 = vsub.f32 %v429, %v488
        %v495 = vsub.f32 %v475, %v491
        %v496 = vmul.f32 %v492, 1.442695
        %v497 = vpow.pop %v496
        %v498 = vmul.f32 %v493, 1.442695
        %v499 = vpow.pop %v498
        %v500 = vmul.f32 %v494, 1.442695
        %v501 = vpow.pop %v500
        %v502 = vmul.f32 %v495, 1.442695
        %v503 = vpow.pop %v502
        %v504 = vsel %vm295, %v497, 0.0
        %505 = vadd.xlane.f32.xlu0 %v504
        %v506 = vpop.xlane.xlu0 %505
        %v507 = vsel %vm295, %v499, 0.0
        %508 = vadd.xlane.f32.xlu0 %v507
        %v509 = vpop.xlane.xlu0 %508
        %v510 = vsel %vm295, %v501, 0.0
        %511 = vadd.xlane.f32.xlu0 %v510
        %v512 = vpop.xlane.xlu0 %511
        %v513 = vsel %vm295, %v503, 0.0
        %514 = vadd.xlane.f32.xlu0 %v513
        %v515 = vpop.xlane.xlu0 %514
        %v516 = vrcp.pop %v506
        %v517 = vrcp.pop %v509
        %v518 = vrcp.pop %v512
        %v519 = vrcp.pop %v515
        %v520 = vmul.f32 %v497, %v516
        %v521 = vmul.f32 %v499, %v517
        %v522 = vmul.f32 %v501, %v518
        %v523 = vmul.f32 %v503, %v519
        %v524 = vpack.c.bf16 %v520, %v520
        %v525 = vpack.c.bf16 %v521, %v521
        %v526 = vpack.c.bf16 %v522, %v522
        %v527 = vpack.c.bf16 %v523, %v523
        %vm528 = vcmask 60416
        %529 = vst.msk [vmem:[%s245] sm:$0xf] %vm528, %v524
        %530 = vst.msk [vmem:[%s245 + $0x4] sm:$0xf] %vm528, %v525
        %531 = vst.msk [vmem:[%s245 + $0x8] sm:$0xf] %vm528, %v526
        %532 = vst.msk [vmem:[%s245 + $0xc] sm:$0xf] %vm528, %v527
        %v534 = vsel %vm295, %v524, 0
        %vm536 = vcmask 1043456
        %v538 = vsel %vm536, %v291, 0
        %540 = vmatprep.subr.bf16.mxu0 0
        %541 = vmatpush1.bf16.msra.mxu0 0
        %542 = vmatprep.subr.bf16.mxu0 0
        %543 = vmatpush1.bf16.msra.mxu0 0
        %544 = vmatprep.subr.bf16.mxu0 0
        %545 = vmatpush1.bf16.msra.mxu0 0
        %546 = vmatprep.subr.bf16.mxu0 0
        %547 = vmatpush1.bf16.msra.mxu0 0
        %548 = vmatprep.subr.bf16.mxu0 0
        %549 = vmatpush1.bf16.msra.mxu0 0
        %550 = vmatprep.subr.bf16.mxu0 0
        %551 = vmatpush1.bf16.msra.mxu0 0
        %552 = vmatprep.subr.bf16.mxu0 0
        %553 = vmatpush1.bf16.msra.mxu0 0
        %554 = vmatprep.subr.bf16.mxu0 0
        %555 = vmatpush1.bf16.msra.mxu0 %v538
        %556 = vmatprep.subr.bf16.mxu0 0
        %557 = vmatpush2.bf16.msra.mxu0 0
        %558 = vmatprep.subr.bf16.mxu0 0
        %559 = vmatpush2.bf16.msra.mxu0 0
        %560 = vmatprep.subr.bf16.mxu0 0
        %561 = vmatpush2.bf16.msra.mxu0 0
        %562 = vmatprep.subr.bf16.mxu0 0
        %563 = vmatpush2.bf16.msra.mxu0 0
        %564 = vmatprep.subr.bf16.mxu0 0
        %565 = vmatpush2.bf16.msra.mxu0 0
        %566 = vmatprep.subr.bf16.mxu0 0
        %567 = vmatpush2.bf16.msra.mxu0 0
        %568 = vmatprep.subr.bf16.mxu0 0
        %569 = vmatpush2.bf16.msra.mxu0 0
        %570 = vmatprep.subr.bf16.mxu0 0
        %571 = vmatpush2.bf16.msra.mxu0 0
        %572 = vmatprep.mubr.bf16.mxu0 0
        %573 = vmatmul.mubr.bf16.gmra.mxu0 %v534
        %v574 = vpop.f32.mrf.mxu0
        %v575 = vadd.f32 0.0, %v574
        %v576 = vpop.f32.mrf.mxu0
        %v577 = vpop.f32.mrf.mxu0
        %v578 = vpop.f32.mrf.mxu0
        %579 = vdwg.mxu0
        %v581 = vsel %vm295, %v525, 0
        %v584 = vsel %vm536, %v292, 0
        %586 = vmatprep.subr.bf16.mxu0 0
        %587 = vmatpush1.bf16.msra.mxu0 0
        %588 = vmatprep.subr.bf16.mxu0 0
        %589 = vmatpush1.bf16.msra.mxu0 0
        %590 = vmatprep.subr.bf16.mxu0 0
        %591 = vmatpush1.bf16.msra.mxu0 0
        %592 = vmatprep.subr.bf16.mxu0 0
        %593 = vmatpush1.bf16.msra.mxu0 0
        %594 = vmatprep.subr.bf16.mxu0 0
        %595 = vmatpush1.bf16.msra.mxu0 0
        %596 = vmatprep.subr.bf16.mxu0 0
        %597 = vmatpush1.bf16.msra.mxu0 0
        %598 = vmatprep.subr.bf16.mxu0 0
        %599 = vmatpush1.bf16.msra.mxu0 0
        %600 = vmatprep.subr.bf16.mxu0 0
        %601 = vmatpush1.bf16.msra.mxu0 %v584
        %602 = vmatprep.subr.bf16.mxu0 0
        %603 = vmatpush2.bf16.msra.mxu0 0
        %604 = vmatprep.subr.bf16.mxu0 0
        %605 = vmatpush2.bf16.msra.mxu0 0
        %606 = vmatprep.subr.bf16.mxu0 0
        %607 = vmatpush2.bf16.msra.mxu0 0
        %608 = vmatprep.subr.bf16.mxu0 0
        %609 = vmatpush2.bf16.msra.mxu0 0
        %610 = vmatprep.subr.bf16.mxu0 0
        %611 = vmatpush2.bf16.msra.mxu0 0
        %612 = vmatprep.subr.bf16.mxu0 0
        %613 = vmatpush2.bf16.msra.mxu0 0
        %614 = vmatprep.subr.bf16.mxu0 0
        %615 = vmatpush2.bf16.msra.mxu0 0
        %616 = vmatprep.subr.bf16.mxu0 0
        %617 = vmatpush2.bf16.msra.mxu0 0
        %618 = vmatprep.mubr.bf16.mxu0 0
        %619 = vmatmul.mubr.bf16.gmra.mxu0 %v581
        %v620 = vpop.f32.mrf.mxu0
        %v621 = vadd.f32 0.0, %v620
        %v622 = vpop.f32.mrf.mxu0
        %v623 = vpop.f32.mrf.mxu0
        %v624 = vpop.f32.mrf.mxu0
        %625 = vdwg.mxu0
        %v627 = vsel %vm295, %v526, 0
        %v630 = vsel %vm536, %v293, 0
        %632 = vmatprep.subr.bf16.mxu0 0
        %633 = vmatpush1.bf16.msra.mxu0 0
        %634 = vmatprep.subr.bf16.mxu0 0
        %635 = vmatpush1.bf16.msra.mxu0 0
        %636 = vmatprep.subr.bf16.mxu0 0
        %637 = vmatpush1.bf16.msra.mxu0 0
        %638 = vmatprep.subr.bf16.mxu0 0
        %639 = vmatpush1.bf16.msra.mxu0 0
        %640 = vmatprep.subr.bf16.mxu0 0
        %641 = vmatpush1.bf16.msra.mxu0 0
        %642 = vmatprep.subr.bf16.mxu0 0
        %643 = vmatpush1.bf16.msra.mxu0 0
        %644 = vmatprep.subr.bf16.mxu0 0
        %645 = vmatpush1.bf16.msra.mxu0 0
        %646 = vmatprep.subr.bf16.mxu0 0
        %647 = vmatpush1.bf16.msra.mxu0 %v630
        %648 = vmatprep.subr.bf16.mxu0 0
        %649 = vmatpush2.bf16.msra.mxu0 0
        %650 = vmatprep.subr.bf16.mxu0 0
        %651 = vmatpush2.bf16.msra.mxu0 0
        %652 = vmatprep.subr.bf16.mxu0 0
        %653 = vmatpush2.bf16.msra.mxu0 0
        %654 = vmatprep.subr.bf16.mxu0 0
        %655 = vmatpush2.bf16.msra.mxu0 0
        %656 = vmatprep.subr.bf16.mxu0 0
        %657 = vmatpush2.bf16.msra.mxu0 0
        %658 = vmatprep.subr.bf16.mxu0 0
        %659 = vmatpush2.bf16.msra.mxu0 0
        %660 = vmatprep.subr.bf16.mxu0 0
        %661 = vmatpush2.bf16.msra.mxu0 0
        %662 = vmatprep.subr.bf16.mxu0 0
        %663 = vmatpush2.bf16.msra.mxu0 0
        %664 = vmatprep.mubr.bf16.mxu0 0
        %665 = vmatmul.mubr.bf16.gmra.mxu0 %v627
        %v666 = vpop.f32.mrf.mxu0
        %v667 = vadd.f32 0.0, %v666
        %v668 = vpop.f32.mrf.mxu0
        %v669 = vpop.f32.mrf.mxu0
        %v670 = vpop.f32.mrf.mxu0
        %671 = vdwg.mxu0
        %v673 = vsel %vm295, %v527, 0
        %v676 = vsel %vm536, %v294, 0
        %678 = vmatprep.subr.bf16.mxu0 0
        %679 = vmatpush1.bf16.msra.mxu0 0
        %680 = vmatprep.subr.bf16.mxu0 0
        %681 = vmatpush1.bf16.msra.mxu0 0
        %682 = vmatprep.subr.bf16.mxu0 0
        %683 = vmatpush1.bf16.msra.mxu0 0
        %684 = vmatprep.subr.bf16.mxu0 0
        %685 = vmatpush1.bf16.msra.mxu0 0
        %686 = vmatprep.subr.bf16.mxu0 0
        %687 = vmatpush1.bf16.msra.mxu0 0
        %688 = vmatprep.subr.bf16.mxu0 0
        %689 = vmatpush1.bf16.msra.mxu0 0
        %690 = vmatprep.subr.bf16.mxu0 0
        %691 = vmatpush1.bf16.msra.mxu0 0
        %692 = vmatprep.subr.bf16.mxu0 0
        %693 = vmatpush1.bf16.msra.mxu0 %v676
        %694 = vmatprep.subr.bf16.mxu0 0
        %695 = vmatpush2.bf16.msra.mxu0 0
        %696 = vmatprep.subr.bf16.mxu0 0
        %697 = vmatpush2.bf16.msra.mxu0 0
        %698 = vmatprep.subr.bf16.mxu0 0
        %699 = vmatpush2.bf16.msra.mxu0 0
        %700 = vmatprep.subr.bf16.mxu0 0
        %701 = vmatpush2.bf16.msra.mxu0 0
        %702 = vmatprep.subr.bf16.mxu0 0
        %703 = vmatpush2.bf16.msra.mxu0 0
        %704 = vmatprep.subr.bf16.mxu0 0
        %705 = vmatpush2.bf16.msra.mxu0 0
        %706 = vmatprep.subr.bf16.mxu0 0
        %707 = vmatpush2.bf16.msra.mxu0 0
        %708 = vmatprep.subr.bf16.mxu0 0
        %709 = vmatpush2.bf16.msra.mxu0 0
        %710 = vmatprep.mubr.bf16.mxu0 0
        %711 = vmatmul.mubr.bf16.gmra.mxu0 %v673
        %v712 = vpop.f32.mrf.mxu0
        %v713 = vadd.f32 0.0, %v712
        %v714 = vpop.f32.mrf.mxu0
        %v715 = vpop.f32.mrf.mxu0
        %v716 = vpop.f32.mrf.mxu0
        %717 = vdwg.mxu0
        %v718 = vpack.c.bf16 %v575, %v575
        %v719 = vpack.c.bf16 %v621, %v621
        %v720 = vpack.c.bf16 %v667, %v667
        %v721 = vpack.c.bf16 %v713, %v713
        %722 = vst.msk [vmem:[%s281] sm:$0xf] %vm528, %v718
        %723 = vst.msk [vmem:[%s281 + $0x4] sm:$0xf] %vm528, %v719
        %724 = vst.msk [vmem:[%s281 + $0x8] sm:$0xf] %vm528, %v720
        %725 = vst.msk [vmem:[%s281 + $0xc] sm:$0xf] %vm528, %v721
        %s726 = sand.u32 %s121, 1
        %s727 = scalar_lea.sflag [#allocation3], %s726
        %s728 = sand.u32 %s121, 1
        %s729 = smul.addr %s728, 16
        %s730 = scalar_lea.vmem [#allocation2], %s729
        %p731 = scmp.lt.s32.totalorder %s23, 1
        %s732 = scalar_select %p731, %s23, 1
        %p733 = scmp.lt.s32.totalorder %s24, 0
        %s734 = scalar_select %p733, %s24, 0
        %s735 = smul.addr %s732, 4
        %s736 = sadd.s32 %s734, %s735
        %s737 = smul.addr %s736, 4
        %s738 = scalar_lea.vmem %s4, %s737
        // Predicated region
        $region33: #{decoder_layer.9} parent=31 // pred_check
          %p739 = pneg %p131
        $region34: #{decoder_layer.9} parent=31 // pred_check_branch
          %741 = sbr.rel (%p739) target = $region36
        $region35: #{decoder_layer.9} parent=31 // pred_region
          %s743 = ssub.s32 256, 256
          %744 = vsyncadd %s727, %s743
          %s745 = smul.addr %s23, 4
          %s746 = sadd.s32 %s24, %s745
          %s747 = smul.addr %s746, 64
          %s748 = scalar_lea.hbm %s3, %s747
          %s749 = sshll.u32 %s730, 4
          %s750 = int_to_ptr.vmem [resolvable:$true] %s749
          %755 = dma.vmem_to_hbm [thread:$0]  %s750, 256, %s748, %s727, 64, 64, 4
        $region36: #{decoder_layer.9} parent=31 // pred_fallthru
          _
        // Predicated region
        $region37: #{decoder_layer.9} parent=31 // pred_check
          %p756 = pneg %p159
        $region38: #{decoder_layer.9} parent=31 // pred_check_branch
          %758 = sbr.rel (%p756) target = $region40
        $region39: #{decoder_layer.9} parent=31 // pred_region
          _
        $region40: #{decoder_layer.9} parent=31 // pred_fallthru
          _
      $region32: #{decoder_layer.9} parent=5 // pred_fallthru
        _
      %p759 = scmp.le.s32.totalorder 2, %s14
      // Predicated region
      $region41: #{decoder_layer.9} parent=5 // pred_check
        %p760 = pneg %p759
      $region42: #{decoder_layer.9} parent=5 // pred_check_branch
        %762 = sbr.rel (%p760) target = $region44
      $region43: #{decoder_layer.9} parent=5 // pred_region
        %s763 = ssub.s32 %s14, 2
        // Predicated region
        $region45: #{decoder_layer.9} parent=43 // pred_check
          %p764 = pneg %p137
        $region46: #{decoder_layer.9} parent=43 // pred_check_branch
          %766 = sbr.rel (%p764) target = $region48
        $region47: #{decoder_layer.9} parent=43 // pred_region
          %s767 = sand.u32 %s122, 1
          %s768 = scalar_lea.sflag [#allocation3], %s767
          %s769 = sand.u32 %s122, 1
          %s770 = smul.addr %s769, 16
          %s771 = scalar_lea.vmem [#allocation2], %s770
          %772 = dma.done %s768, 256
        $region48: #{decoder_layer.9} parent=43 // pred_fallthru
          _
        // Predicated region
        $region49: #{decoder_layer.9} parent=43 // pred_check
          %p773 = pneg %p165
        $region50: #{decoder_layer.9} parent=43 // pred_check_branch
          %775 = sbr.rel (%p773) target = $region52
        $region51: #{decoder_layer.9} parent=43 // pred_region
          %p776 = scmp.lt.s32.totalorder %s25, 1
          %s777 = scalar_select %p776, %s25, 1
          %p778 = scmp.lt.s32.totalorder %s26, 0
          %s779 = scalar_select %p778, %s26, 0
          %s780 = smul.addr %s777, 4
          %s781 = sadd.s32 %s779, %s780
          %s782 = smul.addr %s781, 4
          %s783 = scalar_lea.vmem %s4, %s782
        $region52: #{decoder_layer.9} parent=43 // pred_fallthru
          _
      $region44: #{decoder_layer.9} parent=5 // pred_fallthru
        _
    $region6: #{decoder_layer.9} parent=1 // loop_footer
      %s18 = sadd.s32 1, %s14
    $region7: #{decoder_layer.9} parent=1 // loop_footer_branch
      %13 = sbr.rel target = $region3
    $region8: #{decoder_layer.9} parent=1 // loop_exit
      _
    %784 = vsyncpa [#allocation3], 1
    %s785 = scalar_lea.sflag [#allocation3], 1
    %786 = vsyncpa %s785, 1

// kernel: decoder_layer.15
$region0: #{decoder_layer.15}
  #allocation0 [shape = 'u32[]', space=smem, size = 0x4, offset = 0x4, fixed_abs, tag = 'smem constant byte address 0x4 - core index']
  #allocation1 [shape = 'u32[144,128]{1,0:T(1,128)}', space=vmem, size = 0x12000, scoped, tag = 'internal scratch']
  %s0 = inlined_call_operand.vmem [shape: f32[16,32], index: 0, kind: input, shape index: {}]
  %s1 = inlined_call_operand.vmem [shape: bf16[32,64], index: 1, kind: input, shape index: {}]
  %s2 = inlined_call_operand.vmem [shape: f32[1,64], index: 2, kind: input, shape index: {}]
  %s3 = inlined_call_operand.vmem [shape: bf16[64,32], index: 3, kind: input, shape index: {}]
  %s4 = inlined_call_operand.vmem [shape: f32[1,32], index: 4, kind: input, shape index: {}]
  %s5 = inlined_call_operand.vmem [shape: f32[1,32], index: 5, kind: input, shape index: {}]
  %s6 = inlined_call_operand.vmem [shape: f32[1,32], index: 6, kind: input, shape index: {}]
  %s7 = inlined_call_operand.hbm [shape: f32[16,32], index: 7, kind: output, shape index: {}]
  %s8 = sld [smem:[#allocation0]]
  $region38: #{decoder_layer.15} parent=0
    _
  %s10 = ssub.s32 1, %s8
  %s11 = scalar_select 0, %s10, %s8
  $region1: #{decoder_layer.15} parent=0
    #allocation2 [shape = 'u8[8192]{0}', space=vmem, size = 0x2000, scoped, tag = 'output window, operand 0, single buffered']
    #allocation3 [shape = 's32[1]{0}', space=sflag, size = 0x4, scoped, tag = 'scoped memory for decoder_layer.15']
    %12 = vsyncpa [#allocation3], 0
    // Predicated region
    $region2: #{decoder_layer.15} parent=1 // pred_check
      _
    $region3: #{decoder_layer.15} parent=1 // pred_check_branch
      %14 = sbr.rel (0) target = $region5
    $region4: #{decoder_layer.15} parent=1 // pred_region
      _
    $region5: #{decoder_layer.15} parent=1 // pred_fallthru
      _
    // Predicated region
    $region6: #{decoder_layer.15} parent=1 // pred_check
      _
    $region7: #{decoder_layer.15} parent=1 // pred_check_branch
      %16 = sbr.rel (0) target = $region9
    $region8: #{decoder_layer.15} parent=1 // pred_region
      _
    $region9: #{decoder_layer.15} parent=1 // pred_fallthru
      _
    // Predicated region
    $region10: #{decoder_layer.15} parent=1 // pred_check
      _
    $region11: #{decoder_layer.15} parent=1 // pred_check_branch
      %18 = sbr.rel (0) target = $region13
    $region12: #{decoder_layer.15} parent=1 // pred_region
      _
    $region13: #{decoder_layer.15} parent=1 // pred_fallthru
      _
    // Predicated region
    $region14: #{decoder_layer.15} parent=1 // pred_check
      _
    $region15: #{decoder_layer.15} parent=1 // pred_check_branch
      %20 = sbr.rel (0) target = $region17
    $region16: #{decoder_layer.15} parent=1 // pred_region
      _
    $region17: #{decoder_layer.15} parent=1 // pred_fallthru
      _
    // Predicated region
    $region18: #{decoder_layer.15} parent=1 // pred_check
      _
    $region19: #{decoder_layer.15} parent=1 // pred_check_branch
      %22 = sbr.rel (0) target = $region21
    $region20: #{decoder_layer.15} parent=1 // pred_region
      _
    $region21: #{decoder_layer.15} parent=1 // pred_fallthru
      _
    // Predicated region
    $region22: #{decoder_layer.15} parent=1 // pred_check
      _
    $region23: #{decoder_layer.15} parent=1 // pred_check_branch
      %24 = sbr.rel (0) target = $region25
    $region24: #{decoder_layer.15} parent=1 // pred_region
      _
    $region25: #{decoder_layer.15} parent=1 // pred_fallthru
      _
    // Predicated region
    $region26: #{decoder_layer.15} parent=1 // pred_check
      _
    $region27: #{decoder_layer.15} parent=1 // pred_check_branch
      %26 = sbr.rel (0) target = $region29
    $region28: #{decoder_layer.15} parent=1 // pred_region
      _
    $region29: #{decoder_layer.15} parent=1 // pred_fallthru
      _
    %v28 = vld [vmem:[%s0] sm:$0xff]
    %v29 = vld [vmem:[%s0 + $0x8] sm:$0xff]
    %v30 = vpack.c.bf16 %v29, %v28
    %v31 = vld [vmem:[%s1] sm:$0xf]
    %v32 = vld [vmem:[%s1 + $0x4] sm:$0xf]
    %v33 = vld [vmem:[%s1 + $0x8] sm:$0xf]
    %v34 = vld [vmem:[%s1 + $0xc] sm:$0xf]
    %v35 = vld [vmem:[%s2] sm:$0x1]
    %v37 = vlaneseq
    %v38 = vshrl.u32 %v37, 7
    %v39 = vsub.s32 0, %v38
    %v40 = vrot.slane %v35, %v39
    %v46 = vunpack.c.l.b16 %v31
    %v47 = vunpack.c.l.b16 %v32
    %v48 = vunpack.c.l.b16 %v33
    %v49 = vunpack.c.l.b16 %v34
    %v50 = vpack.c.b16 %v47, %v46
    %v51 = vpack.c.b16 %v49, %v48
    %vm54 = vcmask 261120
    %v56 = vsel %vm54, %v30, 0
    %58 = vmatprep.subr.bf16.mxu0 0
    %59 = vmatpush1.bf16.msra.mxu0 0
    %60 = vmatprep.subr.bf16.mxu0 0
    %61 = vmatpush1.bf16.msra.mxu0 0
    %62 = vmatprep.subr.bf16.mxu0 0
    %63 = vmatpush1.bf16.msra.mxu0 0
    %64 = vmatprep.subr.bf16.mxu0 0
    %65 = vmatpush1.bf16.msra.mxu0 0
    %66 = vmatprep.subr.bf16.mxu0 0
    %67 = vmatpush1.bf16.msra.mxu0 0
    %68 = vmatprep.subr.bf16.mxu0 0
    %69 = vmatpush1.bf16.msra.mxu0 0
    %70 = vmatprep.subr.bf16.mxu0 0
    %71 = vmatpush1.bf16.msra.mxu0 %v51
    %72 = vmatprep.subr.bf16.mxu0 0
    %73 = vmatpush1.bf16.msra.mxu0 %v50
    %74 = vmatprep.subr.bf16.mxu0 0
    %75 = vmatpush2.bf16.msra.mxu0 0
    %76 = vmatprep.subr.bf16.mxu0 0
    %77 = vmatpush2.bf16.msra.mxu0 0
    %78 = vmatprep.subr.bf16.mxu0 0
    %79 = vmatpush2.bf16.msra.mxu0 0
    %80 = vmatprep.subr.bf16.mxu0 0
    %81 = vmatpush2.bf16.msra.mxu0 0
    %82 = vmatprep.subr.bf16.mxu0 0
    %83 = vmatpush2.bf16.msra.mxu0 0
    %84 = vmatprep.subr.bf16.mxu0 0
    %85 = vmatpush2.bf16.msra.mxu0 0
    %86 = vmatprep.subr.bf16.mxu0 0
    %87 = vmatpush2.bf16.msra.mxu0 0
    %88 = vmatprep.subr.bf16.mxu0 0
    %89 = vmatpush2.bf16.msra.mxu0 0
    %90 = vmatprep.mubr.bf16.mxu0 0
    %91 = vmatmul.mubr.bf16.gmra.mxu0 %v56
    %v92 = vpop.f32.mrf.mxu0
    %v93 = vadd.f32 %v40, %v92
    %v94 = vpop.f32.mrf.mxu0
    %v95 = vpop.f32.mrf.mxu0
    %v96 = vadd.f32 %v40, %v95
    %v97 = vpop.f32.mrf.mxu0
    %98 = vdwg.mxu0
    %v99 = vmax.f32 %v93, 0.0
    %v100 = vmax.f32 %v96, 0.0
    %v101 = vpack.c.bf16 %v100, %v99
    %v102 = vld [vmem:[%s3] sm:$0xf]
    %v103 = vld [vmem:[%s3 + $0x4] sm:$0xf]
    %v104 = vld [vmem:[%s3 + $0x8] sm:$0xf]
    %v105 = vld [vmem:[%s3 + $0xc] sm:$0xf]
    %v106 = vld [vmem:[%s3 + $0x10] sm:$0xf]
    %v107 = vld [vmem:[%s3 + $0x14] sm:$0xf]
    %v108 = vld [vmem:[%s3 + $0x18] sm:$0xf]
    %v109 = vld [vmem:[%s3 + $0x1c] sm:$0xf]
    %v110 = vld [vmem:[%s4] sm:$0x1]
    %v112 = vlaneseq
    %v113 = vshrl.u32 %v112, 7
    %v114 = vsub.s32 0, %v113
    %v115 = vrot.slane %v110, %v114
    %v125 = vunpack.c.l.b16 %v102
    %v126 = vunpack.c.l.b16 %v103
    %v127 = vunpack.c.l.b16 %v104
    %v128 = vunpack.c.l.b16 %v105
    %v129 = vunpack.c.l.b16 %v106
    %v130 = vunpack.c.l.b16 %v107
    %v131 = vunpack.c.l.b16 %v108
    %v132 = vunpack.c.l.b16 %v109
    %v133 = vpack.c.b16 %v126, %v125
    %v134 = vpack.c.b16 %v128, %v127
    %v135 = vpack.c.b16 %v130, %v129
    %v136 = vpack.c.b16 %v132, %v131
    %vm141 = vcmask 523264
    %v143 = vsel %vm141, %v101, 0
    %145 = vmatprep.subr.bf16.mxu0 0
    %146 = vmatpush1.bf16.msra.mxu0 0
    %147 = vmatprep.subr.bf16.mxu0 0
    %148 = vmatpush1.bf16.msra.mxu0 0
    %149 = vmatprep.subr.bf16.mxu0 0
    %150 = vmatpush1.bf16.msra.mxu0 0
    %151 = vmatprep.subr.bf16.mxu0 0
    %152 = vmatpush1.bf16.msra.mxu0 0
    %153 = vmatprep.subr.bf16.mxu0 0
    %154 = vmatpush1.bf16.msra.mxu0 %v136
    %155 = vmatprep.subr.bf16.mxu0 0
    %156 = vmatpush1.bf16.msra.mxu0 %v135
    %157 = vmatprep.subr.bf16.mxu0 0
    %158 = vmatpush1.bf16.msra.mxu0 %v134
    %159 = vmatprep.subr.bf16.mxu0 0
    %160 = vmatpush1.bf16.msra.mxu0 %v133
    %161 = vmatprep.subr.bf16.mxu0 0
    %162 = vmatpush2.bf16.msra.mxu0 0
    %163 = vmatprep.subr.bf16.mxu0 0
    %164 = vmatpush2.bf16.msra.mxu0 0
    %165 = vmatprep.subr.bf16.mxu0 0
    %166 = vmatpush2.bf16.msra.mxu0 0
    %167 = vmatprep.subr.bf16.mxu0 0
    %168 = vmatpush2.bf16.msra.mxu0 0
    %169 = vmatprep.subr.bf16.mxu0 0
    %170 = vmatpush2.bf16.msra.mxu0 0
    %171 = vmatprep.subr.bf16.mxu0 0
    %172 = vmatpush2.bf16.msra.mxu0 0
    %173 = vmatprep.subr.bf16.mxu0 0
    %174 = vmatpush2.bf16.msra.mxu0 0
    %175 = vmatprep.subr.bf16.mxu0 0
    %176 = vmatpush2.bf16.msra.mxu0 0
    %177 = vmatprep.mubr.bf16.mxu0 0
    %178 = vmatmul.mubr.bf16.gmra.mxu0 %v143
    %v179 = vpop.f32.mrf.mxu0
    %v180 = vadd.f32 %v115, %v179
    %v181 = vpop.f32.mrf.mxu0
    %v182 = vpop.f32.mrf.mxu0
    %v183 = vadd.f32 %v115, %v182
    %v184 = vpop.f32.mrf.mxu0
    %185 = vdwg.mxu0
    %v186 = vadd.f32 %v180, %v28
    %v187 = vadd.f32 %v183, %v29
    %v188 = vsel %vm54, %v186, 0.0
    %189 = vadd.xlane.f32.xlu0 %v188
    %v190 = vpop.xlane.xlu0 %189
    %v191 = vsel %vm54, %v187, 0.0
    %192 = vadd.xlane.f32.xlu0 %v191
    %v193 = vpop.xlane.xlu0 %192
    %v194 = vrcp.pop 32.0
    %v195 = vmul.f32 %v190, %v194
    %v196 = vmul.f32 %v193, %v194
    %v197 = vsub.f32 %v186, %v195
    %v198 = vsub.f32 %v187, %v196
    %v199 = vmul.f32 %v197, %v197
    %v200 = vmul.f32 %v198, %v198
    %v201 = vsel %vm54, %v199, 0.0
    %202 = vadd.xlane.f32.xlu0 %v201
    %v203 = vpop.xlane.xlu0 %202
    %v204 = vsel %vm54, %v200, 0.0
    %205 = vadd.xlane.f32.xlu0 %v204
    %v206 = vpop.xlane.xlu0 %205
    %v207 = vmul.f32 %v203, %v194
    %v208 = vmul.f32 %v206, %v194
    %v209 = vadd.f32 %v207, 1e-06
    %v210 = vadd.f32 %v208, 1e-06
    %v211 = vrsqrt.pop %v209
    %v212 = vrsqrt.pop %v210
    %v213 = vmul.f32 %v197, %v211
    %v214 = vmul.f32 %v198, %v212
    %v215 = vld [vmem:[%s5] sm:$0x1]
    %v217 = vlaneseq
    %v218 = vshrl.u32 %v217, 7
    %v219 = vsub.s32 0, %v218
    %v220 = vrot.slane %v215, %v219
    %v222 = vmul.f32 %v213, %v220
    %v223 = vmul.f32 %v214, %v220
    %v224 = vld [vmem:[%s6] sm:$0x1]
    %v226 = vlaneseq
    %v227 = vshrl.u32 %v226, 7
    %v228 = vsub.s32 0, %v227
    %v229 = vrot.slane %v224, %v228
    %v231 = vadd.f32 %v222, %v229
    %v232 = vadd.f32 %v223, %v229
    %233 = vst.msk [vmem:[#allocation2] sm:$0xff] %vm54, %v231
    %234 = vst.msk [vmem:[#allocation2 + $0x8] sm:$0xff] %vm54, %v232
    // Predicated region
    $region30: #{decoder_layer.15} parent=1 // pred_check
      _
    $region31: #{decoder_layer.15} parent=1 // pred_check_branch
      %236 = sbr.rel (0) target = $region33
    $region32: #{decoder_layer.15} parent=1 // pred_region
      %s238 = ssub.s32 256, 256
      %239 = vsyncadd [#allocation3], %s238
      %s240 = sshll.u32 [#allocation2], 4
      %s241 = int_to_ptr.vmem [resolvable:$true] %s240
      %246 = dma.vmem_to_hbm [thread:$0]  %s241, 256, %s7, [#allocation3], 128, 128, 8
    $region33: #{decoder_layer.15} parent=1 // pred_fallthru
      _
    // Predicated region
    $region34: #{decoder_layer.15} parent=1 // pred_check
      _
    $region35: #{decoder_layer.15} parent=1 // pred_check_branch
      %248 = sbr.rel (0) target = $region37
    $region36: #{decoder_layer.15} parent=1 // pred_region
      %249 = dma.done [#allocation3], 256
    $region37: #{decoder_layer.15} parent=1 // pred_fallthru
      _
    %250 = vsyncpa [#allocation3], 1

</llo_original>
